<compile_context>
chip_gen: v6e
topology: v6e:2x2x1
jax: 0.10.0
libtpu: 0.0.40
codegen_flags: <defaults>
</compile_context>

<pallas_src>
import jax
import jax.numpy as jnp
import numpy as np
from jax.experimental import pallas as pl
from jax.experimental.pallas import tpu as pltpu


# ---------------------------------------------------------------------------
# Fused Bottleneck kernel (built as a closure over the static geometry)
# ---------------------------------------------------------------------------

def _make_bottleneck_kernel(H, W, Cin, Cm, Cout, TH, n_tiles):
    single = (n_tiles == 1)

    def kernel(x_ref,                       # (H, W, Cin)        bf16 (whole image)
               w1_ref,                      # (Cin, Cm)          bf16
               w2_ref,                      # (3, 3*Cm, Cm)      bf16 (kx stacked on K)
               w3_ref,                      # (Cm, Cout)         bf16
               s1_ref, b1_ref,              # (1, Cm)            f32
               s2_ref, b2_ref,              # (1, Cm)            f32
               s3_ref, b3_ref,              # (1, Cout)          f32
               o_ref,                       # (TH, W, Cout)      out
               pad):                        # (TH+4, W+2, Cm)    bf16 scratch
        i = pl.program_id(1)

        # -- conv2 zero padding in W: zero only the two border columns. ------
        zcol = jnp.zeros((TH + 4, 1, Cm), jnp.bfloat16)
        pad[:, 0:1, :] = zcol
        pad[:, W + 1:W + 2, :] = zcol

        # -- conv1 (1x1) + bn1 + relu: ONE tall matmul over tile + halo rows -
        if single:
            rows = TH
            r0 = 0
            xin = x_ref[...]
            dst0 = 2
        else:
            rows = TH + 2
            r0 = i * TH
            r_start = jnp.clip(r0 - 1, 0, H - (TH + 2))
            xin = x_ref[pl.ds(r_start, rows), :, :]
            dst0 = r_start - r0 + 2           # in {0, 1, 2}

        y1 = jax.lax.dot_general(
            xin.reshape(rows * W, Cin), w1_ref[...],
            dimension_numbers=(((1,), (0,)), ((), ())),
            preferred_element_type=jnp.float32)
        y1 = jnp.maximum(y1 * s1_ref[...] + b1_ref[...], 0.0).astype(jnp.bfloat16)
        # scratch row s holds conv1 of image row (r0 + s - 2); rows 1..TH+2
        # are exactly what conv2 reads below.
        pad[pl.ds(dst0, rows), 1:W + 1, :] = y1.reshape(rows, W, Cm)

        zrow = jnp.zeros((1, W + 2, Cm), jnp.bfloat16)

        @pl.when(i == 0)
        def _zero_top_halo():                 # out-of-image row above the image
            pad[1:2, :, :] = zrow

        @pl.when(i == n_tiles - 1)
        def _zero_bottom_halo():              # out-of-image row below the image
            pad[TH + 2:TH + 3, :, :] = zrow

        # -- conv2 (3x3, pad=1) + bn2 + relu: 3 deep matmuls (K = 3*Cm) ------
        acc = None
        for ky in range(3):                   # static unroll over kernel rows
            tap = jnp.concatenate(
                [pad[1 + ky:1 + ky + TH, kx:kx + W, :] for kx in range(3)],
                axis=-1).reshape(TH * W, 3 * Cm)
            part = jax.lax.dot_general(
                tap, w2_ref[ky],
                dimension_numbers=(((1,), (0,)), ((), ())),
                preferred_element_type=jnp.float32)
            acc = part if acc is None else acc + part
        out2 = jnp.maximum(acc * s2_ref[...] + b2_ref[...], 0.0).astype(jnp.bfloat16)

        # -- conv3 (1x1) + bn3 + residual + relu ------------------------------
        y3 = jax.lax.dot_general(
            out2, w3_ref[...],
            dimension_numbers=(((1,), (0,)), ((), ())),
            preferred_element_type=jnp.float32)
        res_src = xin if single else x_ref[pl.ds(r0, TH), :, :]
        res = res_src.astype(jnp.float32).reshape(TH * W, Cout)
        y3 = jnp.maximum(y3 * s3_ref[...] + b3_ref[...] + res, 0.0)
        o_ref[...] = y3.reshape(TH, W, Cout).astype(o_ref.dtype)

    return kernel


# ---------------------------------------------------------------------------
# VMEM budgeting / tile selection (per-generation)
# ---------------------------------------------------------------------------

def _vmem_budget_bytes():
    cap = 64 * 1024 * 1024                    # conservative: v7x per-TC VMEM
    try:
        info = pltpu.get_tpu_info()
        cap = int(getattr(info, "vmem_capacity_bytes", cap))
    except Exception:
        pass
    return (cap * 3) // 4                     # leave headroom for compiler scratch


def _estimate_vmem(H, W, Cin, Cm, Cout, th, out_bytes):
    x_buf = 2 * H * W * Cin * 2                               # whole-image bf16 x (dbl-buf)
    o_buf = 2 * th * W * Cout * out_bytes                     # output tile (dbl-buf)
    w_buf = 2 * (Cin * Cm + 9 * Cm * Cm + Cm * Cout) * 2      # bf16 weights (dbl-buf)
    sb_buf = 2 * (2 * Cm + Cout) * 4 * 2                      # folded BN scale/bias
    scratch = (th + 4) * (W + 2) * Cm * 2                     # bf16 padded conv1 scratch
    work = th * W * (3 * Cm * 2 + 2 * Cm * 4 + 2 * Cout * 4)  # live taps / accumulators
    return x_buf + o_buf + w_buf + sb_buf + scratch + work


def _pick_tile_h(H, W, Cin, Cm, Cout, out_bytes, budget):
    divisors = [t for t in range(H, 0, -1) if H % t == 0]
    valid = [t for t in divisors if t == H or H >= t + 2]     # halo scheme constraint
    for t in valid:
        if _estimate_vmem(H, W, Cin, Cm, Cout, t, out_bytes) <= budget:
            return t
    return valid[-1]


# ---------------------------------------------------------------------------
# Parameter setup + forward wrapper (plain-JAX glue)
# ---------------------------------------------------------------------------

def _fold_bn(gamma, beta, mean, var, eps=1e-5):
    scale = (gamma / jnp.sqrt(var + eps)).astype(jnp.float32)
    bias = (beta - mean * scale).astype(jnp.float32)
    return scale.reshape(1, -1), bias.reshape(1, -1)


def init_bottleneck_params(key, inplanes, planes):
    exp = 4
    ks = jax.random.split(key, 15)
    p = {}
    # conv weights, PyTorch layout (Cout, Cin, kH, kW)
    p["w1"] = 0.1 * jax.random.normal(ks[0], (planes, inplanes, 1, 1), jnp.float32)
    p["w2"] = 0.1 * jax.random.normal(ks[1], (planes, planes, 3, 3), jnp.float32)
    p["w3"] = 0.1 * jax.random.normal(ks[2], (planes * exp, planes, 1, 1), jnp.float32)
    # batchnorm params (eval mode, running stats) -- nontrivial values
    for i, c in zip((1, 2, 3), (planes, planes, planes * exp)):
        base = 3 + (i - 1) * 4
        p[f"g{i}"] = 0.5 + jax.random.uniform(ks[base + 0], (c,), jnp.float32)
        p[f"b{i}"] = 0.1 * jax.random.normal(ks[base + 1], (c,), jnp.float32)
        p[f"m{i}"] = 0.1 * jax.random.normal(ks[base + 2], (c,), jnp.float32)
        p[f"v{i}"] = 0.5 + jax.random.uniform(ks[base + 3], (c,), jnp.float32)
    return p


def bottleneck_forward(x_nchw, params, tile_h=None, out_dtype=jnp.float32,
                       channels_last_out=False):
    """Bottleneck forward (stride=1, identity residual). Input NCHW."""
    N, Cin, H, W = x_nchw.shape
    planes = params["w1"].shape[0]
    cexp = params["w3"].shape[0]
    assert Cin == cexp, "identity Bottleneck requires inplanes == planes * 4"

    out_bytes = jnp.dtype(out_dtype).itemsize
    budget = _vmem_budget_bytes()
    if tile_h is None:
        tile_h = _pick_tile_h(H, W, Cin, planes, cexp, out_bytes, budget)
    assert H % tile_h == 0, "tile_h must divide H"
    n_tiles = H // tile_h
    assert n_tiles == 1 or H >= tile_h + 2, "halo scheme needs H >= tile_h + 2"

    # NCHW -> NHWC (channels on lanes) + bf16, one fused XLA pass.
    x = jnp.transpose(x_nchw, (0, 2, 3, 1)).astype(jnp.bfloat16)

    # Fold eval-mode BN into per-channel scale/bias; reshape weights for
    # channels-last matmuls.  w2r[ky, kx*Cm + ci, co] == W2_torch[co, ci, ky, kx],
    # i.e. the three kx taps are stacked along the contraction axis.
    s1, b1 = _fold_bn(params["g1"], params["b1"], params["m1"], params["v1"])
    s2, b2 = _fold_bn(params["g2"], params["b2"], params["m2"], params["v2"])
    s3, b3 = _fold_bn(params["g3"], params["b3"], params["m3"], params["v3"])
    w1 = jnp.transpose(params["w1"][:, :, 0, 0], (1, 0)).astype(jnp.bfloat16)
    w2 = jnp.transpose(params["w2"], (2, 3, 1, 0)).reshape(3, 3 * planes, planes)
    w2 = w2.astype(jnp.bfloat16)
    w3 = jnp.transpose(params["w3"][:, :, 0, 0], (1, 0)).astype(jnp.bfloat16)

    kernel = _make_bottleneck_kernel(H, W, Cin, planes, cexp, tile_h, n_tiles)

    def vec_spec(c):
        return pl.BlockSpec((1, c), lambda n, i: (0, 0))

    # Shard primarily on batch across TensorCores when possible so each core
    # keeps the "x DMA'd once per image" property (row-tile axis stays serial).
    dims = ("parallel", "arbitrary") if N >= 2 else ("parallel", "parallel")

    out_nhwc = pl.pallas_call(
        kernel,
        out_shape=jax.ShapeDtypeStruct((N, H, W, cexp), out_dtype),
        grid=(N, n_tiles),
        in_specs=[
            # Whole image per batch index: the block index ignores the row-tile
            # axis, so the pipeline DMAs x once per image and the row tiles
            # (incl. 3x3 halo rows and the residual) read it straight from VMEM.
            pl.BlockSpec((None, H, W, Cin), lambda n, i: (n, 0, 0, 0)),
            pl.BlockSpec((Cin, planes), lambda n, i: (0, 0)),             # w1
            pl.BlockSpec((3, 3 * planes, planes), lambda n, i: (0, 0, 0)),  # w2
            pl.BlockSpec((planes, cexp), lambda n, i: (0, 0)),            # w3
            vec_spec(planes), vec_spec(planes),                           # s1, b1
            vec_spec(planes), vec_spec(planes),                           # s2, b2
            vec_spec(cexp), vec_spec(cexp),                               # s3, b3
        ],
        out_specs=pl.BlockSpec((None, tile_h, W, cexp),
                               lambda n, i: (n, i, 0, 0)),
        scratch_shapes=[pltpu.VMEM((tile_h + 4, W + 2, planes), jnp.bfloat16)],
        compiler_params=pltpu.CompilerParams(
            dimension_semantics=dims,
            vmem_limit_bytes=int(budget)),
    )(x, w1, w2, w3, s1, b1, s2, b2, s3, b3)

    if channels_last_out:
        return out_nhwc
    return jnp.transpose(out_nhwc, (0, 3, 1, 2))                # NHWC -> NCHW


# ---------------------------------------------------------------------------
# Pure-JAX reference (mirrors the PyTorch module) for a sanity check
# ---------------------------------------------------------------------------

def bottleneck_reference(x, params, eps=1e-5):
    def bn(y, i):
        g, b = params[f"g{i}"], params[f"b{i}"]
        m, v = params[f"m{i}"], params[f"v{i}"]
        sh = (1, -1, 1, 1)
        return (y - m.reshape(sh)) / jnp.sqrt(v.reshape(sh) + eps) * g.reshape(sh) + b.reshape(sh)

    def conv(y, w, pad):
        return jax.lax.conv_general_dilated(
            y, w, window_strides=(1, 1), padding=[(pad, pad), (pad, pad)],
            dimension_numbers=("NCHW", "OIHW", "NCHW"))

    residual = x
    out = jax.nn.relu(bn(conv(x, params["w1"], 0), 1))
    out = jax.nn.relu(bn(conv(out, params["w2"], 1), 2))
    out = bn(conv(out, params["w3"], 0), 3)
    return jax.nn.relu(out + residual)


if __name__ == "__main__":
    key = jax.random.PRNGKey(0)
    k_x, k_p = jax.random.split(key)

    N, inplanes, H, W = 2, 16, 16, 16
    planes = 4  # expansion=4 -> out channels = 16 = inplanes (identity block)

    x = jax.random.normal(k_x, (N, inplanes, H, W), jnp.float32)
    params = init_bottleneck_params(k_p, inplanes, planes)

    ref = jax.block_until_ready(bottleneck_reference(x, params))

    # Multi-tile path: tile_h=4 -> 4 row tiles per image, exercising the
    # first / interior / last halo offsets (dst0 = 2 / 1 / 0).
    out_tiled = jax.block_until_ready(bottleneck_forward(x, params, tile_h=4))
    assert out_tiled.shape == (N, planes * 4, H, W)
    np.testing.assert_allclose(np.asarray(out_tiled), np.asarray(ref),
                               rtol=3e-2, atol=3e-2)

    # Auto tile selection (single-tile path at this small H).
    out_auto = jax.block_until_ready(bottleneck_forward(x, params))
    np.testing.assert_allclose(np.asarray(out_auto), np.asarray(ref),
                               rtol=3e-2, atol=3e-2)

    print("KERNEL_OK")
</pallas_src>

<mosaic_0001>
module attributes {stable_mosaic.version = 11 : i64} {
  func.func @kernel(%arg0: i32, %arg1: i32, %arg2: memref<1x16x16x16xbf16, #tpu.memory_space<vmem>>, %arg3: memref<16x4xbf16, #tpu.memory_space<vmem>>, %arg4: memref<3x12x4xbf16, #tpu.memory_space<vmem>>, %arg5: memref<4x16xbf16, #tpu.memory_space<vmem>>, %arg6: memref<1x4xf32, #tpu.memory_space<vmem>>, %arg7: memref<1x4xf32, #tpu.memory_space<vmem>>, %arg8: memref<1x4xf32, #tpu.memory_space<vmem>>, %arg9: memref<1x4xf32, #tpu.memory_space<vmem>>, %arg10: memref<1x16xf32, #tpu.memory_space<vmem>>, %arg11: memref<1x16xf32, #tpu.memory_space<vmem>>, %arg12: memref<1x4x16x16xf32, #tpu.memory_space<vmem>>, %arg13: memref<8x18x4xbf16, #tpu.memory_space<vmem>>) attributes {dimension_semantics = [#tpu.dimension_semantics<parallel>, #tpu.dimension_semantics<arbitrary>], iteration_bounds = array<i64: 2, 4>, scalar_prefetch = 0 : i64, scratch_operands = 1 : i64, tpu.core_type = #tpu.core_type<tc>, window_params = [{transform_indices = @transform_0, window_bounds = array<i64: 1, 16, 16, 16>}, {pipeline_mode = #tpu.pipeline_mode<synchronous>, transform_indices = @transform_1, window_bounds = array<i64: 16, 4>}, {pipeline_mode = #tpu.pipeline_mode<synchronous>, transform_indices = @transform_2, window_bounds = array<i64: 3, 12, 4>}, {pipeline_mode = #tpu.pipeline_mode<synchronous>, transform_indices = @transform_3, window_bounds = array<i64: 4, 16>}, {pipeline_mode = #tpu.pipeline_mode<synchronous>, transform_indices = @transform_4, window_bounds = array<i64: 1, 4>}, {pipeline_mode = #tpu.pipeline_mode<synchronous>, transform_indices = @transform_5, window_bounds = array<i64: 1, 4>}, {pipeline_mode = #tpu.pipeline_mode<synchronous>, transform_indices = @transform_6, window_bounds = array<i64: 1, 4>}, {pipeline_mode = #tpu.pipeline_mode<synchronous>, transform_indices = @transform_7, window_bounds = array<i64: 1, 4>}, {pipeline_mode = #tpu.pipeline_mode<synchronous>, transform_indices = @transform_8, window_bounds = array<i64: 1, 16>}, {pipeline_mode = #tpu.pipeline_mode<synchronous>, transform_indices = @transform_9, window_bounds = array<i64: 1, 16>}, {transform_indices = @transform_10, window_bounds = array<i64: 1, 4, 16, 16>}]} {
    %cst = arith.constant 0.000000e+00 : bf16
    %0 = vector.broadcast %cst : bf16 to vector<8x1x4xbf16>
    %c0 = arith.constant 0 : index
    %c0_0 = arith.constant 0 : index
    %c0_1 = arith.constant 0 : index
    %1 = vector.load %arg13[%c0, %c0_0, %c0_1] : memref<8x18x4xbf16, #tpu.memory_space<vmem>>, vector<8x1x4xbf16>
    tpu.vector_store %arg13[%c0, %c0_0, %c0_1], %0 {strides = array<i32>} : memref<8x18x4xbf16, #tpu.memory_space<vmem>>, vector<8x1x4xbf16>,
    %c0_2 = arith.constant 0 : index
    %c17 = arith.constant 17 : index
    %c0_3 = arith.constant 0 : index
    %2 = vector.load %arg13[%c0_2, %c17, %c0_3] : memref<8x18x4xbf16, #tpu.memory_space<vmem>>, vector<8x1x4xbf16>
    tpu.vector_store %arg13[%c0_2, %c17, %c0_3], %0 {strides = array<i32>} : memref<8x18x4xbf16, #tpu.memory_space<vmem>>, vector<8x1x4xbf16>,
    %c4_i32 = arith.constant 4 : i32
    %3 = arith.muli %arg1, %c4_i32 : i32
    %c1_i32 = arith.constant 1 : i32
    %4 = arith.subi %3, %c1_i32 : i32
    %c0_i32 = arith.constant 0 : i32
    %c10_i32 = arith.constant 10 : i32
    %5 = arith.maxsi %c0_i32, %4 : i32
    %6 = arith.minsi %c10_i32, %5 : i32
    %c0_4 = arith.constant 0 : index
    %7 = arith.index_cast %6 : i32 to index
    %c0_5 = arith.constant 0 : index
    %c0_6 = arith.constant 0 : index
    %8 = vector.load %arg2[%c0_4, %7, %c0_5, %c0_6] : memref<1x16x16x16xbf16, #tpu.memory_space<vmem>>, vector<1x6x16x16xbf16>
    %9 = vector.shape_cast %8 : vector<1x6x16x16xbf16> to vector<6x16x16xbf16>
    %10 = arith.subi %6, %3 : i32
    %c2_i32 = arith.constant 2 : i32
    %11 = arith.addi %10, %c2_i32 : i32
    %12 = vector.shape_cast %9 : vector<6x16x16xbf16> to vector<96x16xbf16>
    %c0_7 = arith.constant 0 : index
    %c0_8 = arith.constant 0 : index
    %13 = vector.load %arg3[%c0_7, %c0_8] : memref<16x4xbf16, #tpu.memory_space<vmem>>, vector<16x4xbf16>
    %cst_9 = arith.constant dense<0.000000e+00> : vector<96x4xf32>
    %14 = tpu.matmul %12, %13, %cst_9 {dimension_numbers = #tpu.dot_dimension_numbers<[1], [0], [0], [1], [0, 0, 1, 1], [], []>} : vector<96x16xbf16>, vector<16x4xbf16>, vector<96x4xf32> -> vector<96x4xf32>
    %c0_10 = arith.constant 0 : index
    %c0_11 = arith.constant 0 : index
    %15 = vector.load %arg6[%c0_10, %c0_11] : memref<1x4xf32, #tpu.memory_space<vmem>>, vector<1x4xf32>
    %16 = vector.broadcast %15 : vector<1x4xf32> to vector<96x4xf32>
    %17 = arith.mulf %14, %16 : vector<96x4xf32>
    %c0_12 = arith.constant 0 : index
    %c0_13 = arith.constant 0 : index
    %18 = vector.load %arg7[%c0_12, %c0_13] : memref<1x4xf32, #tpu.memory_space<vmem>>, vector<1x4xf32>
    %19 = vector.broadcast %18 : vector<1x4xf32> to vector<96x4xf32>
    %20 = arith.addf %17, %19 : vector<96x4xf32>
    %cst_14 = arith.constant 0.000000e+00 : f32
    %21 = vector.broadcast %cst_14 : f32 to vector<96x4xf32>
    %22 = arith.maximumf %20, %21 : vector<96x4xf32>
    %23 = arith.truncf %22 : vector<96x4xf32> to vector<96x4xbf16>
    %24 = vector.shape_cast %23 : vector<96x4xbf16> to vector<6x16x4xbf16>
    %25 = arith.index_cast %11 : i32 to index
    %c1 = arith.constant 1 : index
    %c0_15 = arith.constant 0 : index
    %26 = vector.load %arg13[%25, %c1, %c0_15] : memref<8x18x4xbf16, #tpu.memory_space<vmem>>, vector<6x16x4xbf16>
    tpu.vector_store %arg13[%25, %c1, %c0_15], %24 {strides = array<i32>} : memref<8x18x4xbf16, #tpu.memory_space<vmem>>, vector<6x16x4xbf16>,
    %cst_16 = arith.constant 0.000000e+00 : bf16
    %27 = vector.broadcast %cst_16 : bf16 to vector<1x18x4xbf16>
    %c0_i32_17 = arith.constant 0 : i32
    %28 = arith.cmpi eq, %arg1, %c0_i32_17 : i32
    %29 = arith.extui %28 : i1 to i32
    %c0_i32_18 = arith.constant 0 : i32
    %30 = arith.cmpi ne, %29, %c0_i32_18 : i32
    scf.if %30 {
      %c1_77 = arith.constant 1 : index
      %c0_78 = arith.constant 0 : index
      %c0_79 = arith.constant 0 : index
      %89 = vector.load %arg13[%c1_77, %c0_78, %c0_79] : memref<8x18x4xbf16, #tpu.memory_space<vmem>>, vector<1x18x4xbf16>
      tpu.vector_store %arg13[%c1_77, %c0_78, %c0_79], %27 {strides = array<i32>} : memref<8x18x4xbf16, #tpu.memory_space<vmem>>, vector<1x18x4xbf16>,
    } else {
    }
    %c3_i32 = arith.constant 3 : i32
    %31 = arith.cmpi eq, %arg1, %c3_i32 : i32
    %32 = arith.extui %31 : i1 to i32
    %c0_i32_19 = arith.constant 0 : i32
    %33 = arith.cmpi ne, %32, %c0_i32_19 : i32
    scf.if %33 {
      %c6 = arith.constant 6 : index
      %c0_77 = arith.constant 0 : index
      %c0_78 = arith.constant 0 : index
      %89 = vector.load %arg13[%c6, %c0_77, %c0_78] : memref<8x18x4xbf16, #tpu.memory_space<vmem>>, vector<1x18x4xbf16>
      tpu.vector_store %arg13[%c6, %c0_77, %c0_78], %27 {strides = array<i32>} : memref<8x18x4xbf16, #tpu.memory_space<vmem>>, vector<1x18x4xbf16>,
    } else {
    }
    %c1_20 = arith.constant 1 : index
    %c0_21 = arith.constant 0 : index
    %c0_22 = arith.constant 0 : index
    %34 = vector.load %arg13[%c1_20, %c0_21, %c0_22] : memref<8x18x4xbf16, #tpu.memory_space<vmem>>, vector<4x16x4xbf16>
    %c1_23 = arith.constant 1 : index
    %c1_24 = arith.constant 1 : index
    %c0_25 = arith.constant 0 : index
    %35 = vector.load %arg13[%c1_23, %c1_24, %c0_25] : memref<8x18x4xbf16, #tpu.memory_space<vmem>>, vector<4x16x4xbf16>
    %c1_26 = arith.constant 1 : index
    %c2 = arith.constant 2 : index
    %c0_27 = arith.constant 0 : index
    %36 = vector.load %arg13[%c1_26, %c2, %c0_27] : memref<8x18x4xbf16, #tpu.memory_space<vmem>>, vector<4x16x4xbf16>
    %37 = tpu.concatenate %34, %35, %36 in 2 : vector<4x16x4xbf16>, vector<4x16x4xbf16>, vector<4x16x4xbf16> -> vector<4x16x12xbf16>
    %38 = vector.shape_cast %37 : vector<4x16x12xbf16> to vector<64x12xbf16>
    %c0_28 = arith.constant 0 : index
    %c0_29 = arith.constant 0 : index
    %c0_30 = arith.constant 0 : index
    %39 = vector.load %arg4[%c0_28, %c0_29, %c0_30] : memref<3x12x4xbf16, #tpu.memory_space<vmem>>, vector<1x12x4xbf16>
    %40 = vector.shape_cast %39 : vector<1x12x4xbf16> to vector<12x4xbf16>
    %cst_31 = arith.constant dense<0.000000e+00> : vector<64x4xf32>
    %41 = tpu.matmul %38, %40, %cst_31 {dimension_numbers = #tpu.dot_dimension_numbers<[1], [0], [0], [1], [0, 0, 1, 1], [], []>} : vector<64x12xbf16>, vector<12x4xbf16>, vector<64x4xf32> -> vector<64x4xf32>
    %c2_32 = arith.constant 2 : index
    %c0_33 = arith.constant 0 : index
    %c0_34 = arith.constant 0 : index
    %42 = vector.load %arg13[%c2_32, %c0_33, %c0_34] : memref<8x18x4xbf16, #tpu.memory_space<vmem>>, vector<4x16x4xbf16>
    %c2_35 = arith.constant 2 : index
    %c1_36 = arith.constant 1 : index
    %c0_37 = arith.constant 0 : index
    %43 = vector.load %arg13[%c2_35, %c1_36, %c0_37] : memref<8x18x4xbf16, #tpu.memory_space<vmem>>, vector<4x16x4xbf16>
    %c2_38 = arith.constant 2 : index
    %c2_39 = arith.constant 2 : index
    %c0_40 = arith.constant 0 : index
    %44 = vector.load %arg13[%c2_38, %c2_39, %c0_40] : memref<8x18x4xbf16, #tpu.memory_space<vmem>>, vector<4x16x4xbf16>
    %45 = tpu.concatenate %42, %43, %44 in 2 : vector<4x16x4xbf16>, vector<4x16x4xbf16>, vector<4x16x4xbf16> -> vector<4x16x12xbf16>
    %46 = vector.shape_cast %45 : vector<4x16x12xbf16> to vector<64x12xbf16>
    %c1_41 = arith.constant 1 : index
    %c0_42 = arith.constant 0 : index
    %c0_43 = arith.constant 0 : index
    %47 = vector.load %arg4[%c1_41, %c0_42, %c0_43] : memref<3x12x4xbf16, #tpu.memory_space<vmem>>, vector<1x12x4xbf16>
    %48 = vector.shape_cast %47 : vector<1x12x4xbf16> to vector<12x4xbf16>
    %cst_44 = arith.constant dense<0.000000e+00> : vector<64x4xf32>
    %49 = tpu.matmul %46, %48, %cst_44 {dimension_numbers = #tpu.dot_dimension_numbers<[1], [0], [0], [1], [0, 0, 1, 1], [], []>} : vector<64x12xbf16>, vector<12x4xbf16>, vector<64x4xf32> -> vector<64x4xf32>
    %50 = arith.addf %41, %49 : vector<64x4xf32>
    %c3 = arith.constant 3 : index
    %c0_45 = arith.constant 0 : index
    %c0_46 = arith.constant 0 : index
    %51 = vector.load %arg13[%c3, %c0_45, %c0_46] : memref<8x18x4xbf16, #tpu.memory_space<vmem>>, vector<4x16x4xbf16>
    %c3_47 = arith.constant 3 : index
    %c1_48 = arith.constant 1 : index
    %c0_49 = arith.constant 0 : index
    %52 = vector.load %arg13[%c3_47, %c1_48, %c0_49] : memref<8x18x4xbf16, #tpu.memory_space<vmem>>, vector<4x16x4xbf16>
    %c3_50 = arith.constant 3 : index
    %c2_51 = arith.constant 2 : index
    %c0_52 = arith.constant 0 : index
    %53 = vector.load %arg13[%c3_50, %c2_51, %c0_52] : memref<8x18x4xbf16, #tpu.memory_space<vmem>>, vector<4x16x4xbf16>
    %54 = tpu.concatenate %51, %52, %53 in 2 : vector<4x16x4xbf16>, vector<4x16x4xbf16>, vector<4x16x4xbf16> -> vector<4x16x12xbf16>
    %55 = vector.shape_cast %54 : vector<4x16x12xbf16> to vector<64x12xbf16>
    %c2_53 = arith.constant 2 : index
    %c0_54 = arith.constant 0 : index
    %c0_55 = arith.constant 0 : index
    %56 = vector.load %arg4[%c2_53, %c0_54, %c0_55] : memref<3x12x4xbf16, #tpu.memory_space<vmem>>, vector<1x12x4xbf16>
    %57 = vector.shape_cast %56 : vector<1x12x4xbf16> to vector<12x4xbf16>
    %cst_56 = arith.constant dense<0.000000e+00> : vector<64x4xf32>
    %58 = tpu.matmul %55, %57, %cst_56 {dimension_numbers = #tpu.dot_dimension_numbers<[1], [0], [0], [1], [0, 0, 1, 1], [], []>} : vector<64x12xbf16>, vector<12x4xbf16>, vector<64x4xf32> -> vector<64x4xf32>
    %59 = arith.addf %50, %58 : vector<64x4xf32>
    %c0_57 = arith.constant 0 : index
    %c0_58 = arith.constant 0 : index
    %60 = vector.load %arg8[%c0_57, %c0_58] : memref<1x4xf32, #tpu.memory_space<vmem>>, vector<1x4xf32>
    %61 = vector.broadcast %60 : vector<1x4xf32> to vector<64x4xf32>
    %62 = arith.mulf %59, %61 : vector<64x4xf32>
    %c0_59 = arith.constant 0 : index
    %c0_60 = arith.constant 0 : index
    %63 = vector.load %arg9[%c0_59, %c0_60] : memref<1x4xf32, #tpu.memory_space<vmem>>, vector<1x4xf32>
    %64 = vector.broadcast %63 : vector<1x4xf32> to vector<64x4xf32>
    %65 = arith.addf %62, %64 : vector<64x4xf32>
    %cst_61 = arith.constant 0.000000e+00 : f32
    %66 = vector.broadcast %cst_61 : f32 to vector<64x4xf32>
    %67 = arith.maximumf %65, %66 : vector<64x4xf32>
    %68 = arith.truncf %67 : vector<64x4xf32> to vector<64x4xbf16>
    %c0_62 = arith.constant 0 : index
    %c0_63 = arith.constant 0 : index
    %69 = vector.load %arg5[%c0_62, %c0_63] : memref<4x16xbf16, #tpu.memory_space<vmem>>, vector<4x16xbf16>
    %cst_64 = arith.constant dense<0.000000e+00> : vector<64x16xf32>
    %70 = tpu.matmul %68, %69, %cst_64 {dimension_numbers = #tpu.dot_dimension_numbers<[1], [0], [0], [1], [0, 0, 1, 1], [], []>} : vector<64x4xbf16>, vector<4x16xbf16>, vector<64x16xf32> -> vector<64x16xf32>
    %c0_65 = arith.constant 0 : index
    %71 = arith.index_cast %3 : i32 to index
    %c0_66 = arith.constant 0 : index
    %c0_67 = arith.constant 0 : index
    %72 = vector.load %arg2[%c0_65, %71, %c0_66, %c0_67] : memref<1x16x16x16xbf16, #tpu.memory_space<vmem>>, vector<1x4x16x16xbf16>
    %73 = vector.shape_cast %72 : vector<1x4x16x16xbf16> to vector<4x16x16xbf16>
    %74 = arith.extf %73 : vector<4x16x16xbf16> to vector<4x16x16xf32>
    %75 = vector.shape_cast %74 : vector<4x16x16xf32> to vector<64x16xf32>
    %c0_68 = arith.constant 0 : index
    %c0_69 = arith.constant 0 : index
    %76 = vector.load %arg10[%c0_68, %c0_69] : memref<1x16xf32, #tpu.memory_space<vmem>>, vector<1x16xf32>
    %77 = vector.broadcast %76 : vector<1x16xf32> to vector<64x16xf32>
    %78 = arith.mulf %70, %77 : vector<64x16xf32>
    %c0_70 = arith.constant 0 : index
    %c0_71 = arith.constant 0 : index
    %79 = vector.load %arg11[%c0_70, %c0_71] : memref<1x16xf32, #tpu.memory_space<vmem>>, vector<1x16xf32>
    %80 = vector.broadcast %79 : vector<1x16xf32> to vector<64x16xf32>
    %81 = arith.addf %78, %80 : vector<64x16xf32>
    %82 = arith.addf %81, %75 : vector<64x16xf32>
    %cst_72 = arith.constant 0.000000e+00 : f32
    %83 = vector.broadcast %cst_72 : f32 to vector<64x16xf32>
    %84 = arith.maximumf %82, %83 : vector<64x16xf32>
    %85 = vector.shape_cast %84 : vector<64x16xf32> to vector<4x16x16xf32>
    %c0_73 = arith.constant 0 : index
    %c0_74 = arith.constant 0 : index
    %c0_75 = arith.constant 0 : index
    %c0_76 = arith.constant 0 : index
    %86 = vector.load %arg12[%c0_73, %c0_74, %c0_75, %c0_76] : memref<1x4x16x16xf32, #tpu.memory_space<vmem>>, vector<1x4x16x16xf32>
    %87 = vector.shape_cast %86 : vector<1x4x16x16xf32> to vector<4x16x16xf32>
    %88 = vector.shape_cast %85 : vector<4x16x16xf32> to vector<1x4x16x16xf32>
    tpu.vector_store %arg12[%c0_73, %c0_74, %c0_75, %c0_76], %88 {strides = array<i32>} : memref<1x4x16x16xf32, #tpu.memory_space<vmem>>, vector<1x4x16x16xf32>,
    return
  }
  func.func @transform_0(%arg0: i32, %arg1: i32) -> (i32, i32, i32, i32) {
    %c0_i32 = arith.constant 0 : i32
    %c0_i32_0 = arith.constant 0 : i32
    %c0_i32_1 = arith.constant 0 : i32
    %c0_i32_2 = arith.constant 0 : i32
    return %arg0, %c0_i32, %c0_i32_0, %c0_i32_1 : i32, i32, i32, i32
  }
  func.func @transform_1(%arg0: i32, %arg1: i32) -> (i32, i32) {
    %c0_i32 = arith.constant 0 : i32
    %c0_i32_0 = arith.constant 0 : i32
    %c0_i32_1 = arith.constant 0 : i32
    return %c0_i32, %c0_i32_0 : i32, i32
  }
  func.func @transform_2(%arg0: i32, %arg1: i32) -> (i32, i32, i32) {
    %c0_i32 = arith.constant 0 : i32
    %c0_i32_0 = arith.constant 0 : i32
    %c0_i32_1 = arith.constant 0 : i32
    %c0_i32_2 = arith.constant 0 : i32
    return %c0_i32, %c0_i32_0, %c0_i32_1 : i32, i32, i32
  }
  func.func @transform_3(%arg0: i32, %arg1: i32) -> (i32, i32) {
    %c0_i32 = arith.constant 0 : i32
    %c0_i32_0 = arith.constant 0 : i32
    %c0_i32_1 = arith.constant 0 : i32
    return %c0_i32, %c0_i32_0 : i32, i32
  }
  func.func @transform_4(%arg0: i32, %arg1: i32) -> (i32, i32) {
    %c0_i32 = arith.constant 0 : i32
    %c0_i32_0 = arith.constant 0 : i32
    %c0_i32_1 = arith.constant 0 : i32
    return %c0_i32, %c0_i32_0 : i32, i32
  }
  func.func @transform_5(%arg0: i32, %arg1: i32) -> (i32, i32) {
    %c0_i32 = arith.constant 0 : i32
    %c0_i32_0 = arith.constant 0 : i32
    %c0_i32_1 = arith.constant 0 : i32
    return %c0_i32, %c0_i32_0 : i32, i32
  }
  func.func @transform_6(%arg0: i32, %arg1: i32) -> (i32, i32) {
    %c0_i32 = arith.constant 0 : i32
    %c0_i32_0 = arith.constant 0 : i32
    %c0_i32_1 = arith.constant 0 : i32
    return %c0_i32, %c0_i32_0 : i32, i32
  }
  func.func @transform_7(%arg0: i32, %arg1: i32) -> (i32, i32) {
    %c0_i32 = arith.constant 0 : i32
    %c0_i32_0 = arith.constant 0 : i32
    %c0_i32_1 = arith.constant 0 : i32
    return %c0_i32, %c0_i32_0 : i32, i32
  }
  func.func @transform_8(%arg0: i32, %arg1: i32) -> (i32, i32) {
    %c0_i32 = arith.constant 0 : i32
    %c0_i32_0 = arith.constant 0 : i32
    %c0_i32_1 = arith.constant 0 : i32
    return %c0_i32, %c0_i32_0 : i32, i32
  }
  func.func @transform_9(%arg0: i32, %arg1: i32) -> (i32, i32) {
    %c0_i32 = arith.constant 0 : i32
    %c0_i32_0 = arith.constant 0 : i32
    %c0_i32_1 = arith.constant 0 : i32
    return %c0_i32, %c0_i32_0 : i32, i32
  }
  func.func @transform_10(%arg0: i32, %arg1: i32) -> (i32, i32, i32, i32) {
    %c0_i32 = arith.constant 0 : i32
    %c0_i32_0 = arith.constant 0 : i32
    %c0_i32_1 = arith.constant 0 : i32
    return %arg0, %arg1, %c0_i32, %c0_i32_0 : i32, i32, i32, i32
  }
}

</mosaic_0001>

<llo_original>
// kernel: tpu_custom_call.1
$region0: #{tpu_custom_call.1}
  #allocation0 [shape = 'u32[]', space=smem, size = 0x4, offset = 0x4, fixed_abs, tag = 'smem constant byte address 0x4 - core index']
  #allocation1 [shape = 'u32[144,128]{1,0:T(1,128)}', space=vmem, size = 0x12000, scoped, tag = 'internal scratch']
  #allocation2 [shape = 'bf16[8,18,4]{2,1,0:T(8,128)(2,1)}', space=vmem, size = 0xc000, scoped, tag = 'scratch operand']
  %s0 = inlined_call_operand.hbm [shape: bf16[2,16,16,16], index: 0, kind: input, shape index: {}]
  %s1 = inlined_call_operand.vmem [shape: bf16[16,4], index: 1, kind: input, shape index: {}]
  %s2 = inlined_call_operand.vmem [shape: bf16[3,12,4], index: 2, kind: input, shape index: {}]
  %s3 = inlined_call_operand.vmem [shape: bf16[4,16], index: 3, kind: input, shape index: {}]
  %s4 = inlined_call_operand.vmem [shape: f32[1,4], index: 4, kind: input, shape index: {}]
  %s5 = inlined_call_operand.vmem [shape: f32[1,4], index: 5, kind: input, shape index: {}]
  %s6 = inlined_call_operand.vmem [shape: f32[1,4], index: 6, kind: input, shape index: {}]
  %s7 = inlined_call_operand.vmem [shape: f32[1,4], index: 7, kind: input, shape index: {}]
  %s8 = inlined_call_operand.vmem [shape: f32[1,16], index: 8, kind: input, shape index: {}]
  %s9 = inlined_call_operand.vmem [shape: f32[1,16], index: 9, kind: input, shape index: {}]
  %s10 = inlined_call_operand.hbm [shape: f32[2,16,16,16], index: 10, kind: output, shape index: {}]
  %s11 = sld [smem:[#allocation0]]
  $region85: #{tpu_custom_call.1} parent=0
    _
  %s13 = ssub.s32 1, %s11
  %s14 = scalar_select 0, %s13, %s11
  $region1: #{tpu_custom_call.1} parent=0
    #allocation3 [shape = 'u8[131072]{0}', space=vmem, size = 0x20000, scoped, tag = 'input window, operand 0']
    #allocation4 [shape = 's32[2]{0}', space=sflag, size = 0x8, scoped, tag = 'scoped memory for tpu_custom_call.1']
    #allocation5 [shape = 's32[2]{0}', space=sflag, size = 0x8, scoped, tag = 'scoped memory for tpu_custom_call.1']
    #allocation6 [shape = 'u8[65536]{0}', space=vmem, size = 0x10000, scoped, tag = 'output window, operand 0']
    %15 = vsyncpa [#allocation4], 0
    %s16 = scalar_lea.sflag [#allocation4], 1
    %17 = vsyncpa %s16, 0
    %18 = vsyncpa [#allocation5], 0
    %s19 = scalar_lea.sflag [#allocation5], 1
    %20 = vsyncpa %s19, 0
    loop: start=0, step=1, limit=10
    $region2: #{tpu_custom_call.1} parent=1 // loop_pre_header
      _
    $region3: #{tpu_custom_call.1} parent=1 // loop_header
      %s22 = sphi 0, %s26
      %p23 = scmp.ge.s32.totalorder %s22, 10
      %s29 = sphi 0, %s41
      %s30 = sphi 0, %s37
      %s31 = sphi 0, %s29
      %s32 = sphi 0, %s30
      %s33 = sphi 0, %s31
      %s34 = sphi 0, %s32
      %s44 = sphi 0, %s46
      %s47 = sphi 0, %s44
      %s48 = sphi 0, %s47
      %s64 = sphi 0, %s48
      %s68 = sphi 0, %s68
      %s70 = sphi 0, %s68
      %s71 = sphi 0, %s70
      %s85 = sphi 0, %s71
      %s89 = sphi 0, %s89
      %s91 = sphi 0, %s89
      %s92 = sphi 0, %s91
      %s106 = sphi 0, %s92
      %s110 = sphi 0, %s110
      %s112 = sphi 0, %s110
      %s113 = sphi 0, %s112
      %s127 = sphi 0, %s113
      %s131 = sphi 0, %s131
      %s133 = sphi 0, %s131
      %s134 = sphi 0, %s133
      %s148 = sphi 0, %s134
      %s152 = sphi 0, %s152
      %s154 = sphi 0, %s152
      %s155 = sphi 0, %s154
      %s169 = sphi 0, %s155
      %s173 = sphi 0, %s173
      %s175 = sphi 0, %s173
      %s176 = sphi 0, %s175
      %s190 = sphi 0, %s176
      %s194 = sphi 0, %s194
      %s196 = sphi 0, %s194
      %s197 = sphi 0, %s196
      %s211 = sphi 0, %s197
      %s215 = sphi 0, %s215
      %s217 = sphi 0, %s215
      %s218 = sphi 0, %s217
      %s232 = sphi 0, %s218
      %s236 = sphi 0, %s236
      %s238 = sphi 0, %s236
      %s239 = sphi 0, %s238
      %s253 = sphi 0, %s239
      %s261 = sphi 0, %s263
      %s264 = sphi 0, %s261
      %s265 = sphi 0, %s264
      %s281 = sphi 0, %s265
    $region4: #{tpu_custom_call.1} parent=1 // loop_header_branch
      %25 = sbr.rel (%p23) target = $region8
    $region5: #{tpu_custom_call.1} parent=1 // loop_body
      %s27 = ssub.s32 %s22, 1
      %s28 = ssub.s32 %s22, 2
      %s35 = sadd.s32 1, %s30
      %p36 = scmp.ge.s32.totalorder %s35, 4
      %s37 = scalar_select %p36, 0, %s35
      %s38 = sadd.s32 1, %s29
      %s39 = scalar_select %p36, %s38, %s29
      %p40 = scmp.ge.s32.totalorder %s39, 2
      %s41 = scalar_select %p40, 0, %s39
      %s42 = ssub.s32 %s29, %s41
      %p43 = scmp.eq.s32.totalorder %s42, 0
      %s45 = sadd.s32 %s44, 1
      %s46 = scalar_select %p43, %s44, %s45
      %p49 = pneg %p43
      %p50 = scmp.eq.s32.totalorder %s22, 7
      %p51 = por %p49, %p50
      %p52 = scmp.ne.s32.totalorder %s44, %s47
      %p53 = scmp.eq.s32.totalorder %s22, 0
      %p54 = por %p52, %p53
      %p55 = scmp.ne.s32.totalorder %s44, %s47
      %p56 = scmp.eq.s32.totalorder %s27, 7
      %p57 = por %p55, %p56
      %p58 = scmp.ne.s32.totalorder %s47, %s48
      %p59 = scmp.eq.s32.totalorder %s27, 0
      %p60 = por %p58, %p59
      %p61 = scmp.ne.s32.totalorder %s47, %s48
      %p62 = scmp.eq.s32.totalorder %s28, 7
      %p63 = por %p61, %p62
      %p65 = scmp.ne.s32.totalorder %s48, %s64
      %p66 = scmp.eq.s32.totalorder %s28, 0
      %p67 = por %p65, %p66
      %s69 = sadd.s32 %s68, 1
      %p72 = scmp.eq.s32.totalorder %s22, 7
      %p73 = scmp.ne.s32.totalorder %s68, %s70
      %p74 = scmp.eq.s32.totalorder %s22, 0
      %p75 = por %p73, %p74
      %p76 = scmp.ne.s32.totalorder %s68, %s70
      %p77 = scmp.eq.s32.totalorder %s27, 7
      %p78 = por %p76, %p77
      %p79 = scmp.ne.s32.totalorder %s70, %s71
      %p80 = scmp.eq.s32.totalorder %s27, 0
      %p81 = por %p79, %p80
      %p82 = scmp.ne.s32.totalorder %s70, %s71
      %p83 = scmp.eq.s32.totalorder %s28, 7
      %p84 = por %p82, %p83
      %p86 = scmp.ne.s32.totalorder %s71, %s85
      %p87 = scmp.eq.s32.totalorder %s28, 0
      %p88 = por %p86, %p87
      %s90 = sadd.s32 %s89, 1
      %p93 = scmp.eq.s32.totalorder %s22, 7
      %p94 = scmp.ne.s32.totalorder %s89, %s91
      %p95 = scmp.eq.s32.totalorder %s22, 0
      %p96 = por %p94, %p95
      %p97 = scmp.ne.s32.totalorder %s89, %s91
      %p98 = scmp.eq.s32.totalorder %s27, 7
      %p99 = por %p97, %p98
      %p100 = scmp.ne.s32.totalorder %s91, %s92
      %p101 = scmp.eq.s32.totalorder %s27, 0
      %p102 = por %p100, %p101
      %p103 = scmp.ne.s32.totalorder %s91, %s92
      %p104 = scmp.eq.s32.totalorder %s28, 7
      %p105 = por %p103, %p104
      %p107 = scmp.ne.s32.totalorder %s92, %s106
      %p108 = scmp.eq.s32.totalorder %s28, 0
      %p109 = por %p107, %p108
      %s111 = sadd.s32 %s110, 1
      %p114 = scmp.eq.s32.totalorder %s22, 7
      %p115 = scmp.ne.s32.totalorder %s110, %s112
      %p116 = scmp.eq.s32.totalorder %s22, 0
      %p117 = por %p115, %p116
      %p118 = scmp.ne.s32.totalorder %s110, %s112
      %p119 = scmp.eq.s32.totalorder %s27, 7
      %p120 = por %p118, %p119
      %p121 = scmp.ne.s32.totalorder %s112, %s113
      %p122 = scmp.eq.s32.totalorder %s27, 0
      %p123 = por %p121, %p122
      %p124 = scmp.ne.s32.totalorder %s112, %s113
      %p125 = scmp.eq.s32.totalorder %s28, 7
      %p126 = por %p124, %p125
      %p128 = scmp.ne.s32.totalorder %s113, %s127
      %p129 = scmp.eq.s32.totalorder %s28, 0
      %p130 = por %p128, %p129
      %s132 = sadd.s32 %s131, 1
      %p135 = scmp.eq.s32.totalorder %s22, 7
      %p136 = scmp.ne.s32.totalorder %s131, %s133
      %p137 = scmp.eq.s32.totalorder %s22, 0
      %p138 = por %p136, %p137
      %p139 = scmp.ne.s32.totalorder %s131, %s133
      %p140 = scmp.eq.s32.totalorder %s27, 7
      %p141 = por %p139, %p140
      %p142 = scmp.ne.s32.totalorder %s133, %s134
      %p143 = scmp.eq.s32.totalorder %s27, 0
      %p144 = por %p142, %p143
      %p145 = scmp.ne.s32.totalorder %s133, %s134
      %p146 = scmp.eq.s32.totalorder %s28, 7
      %p147 = por %p145, %p146
      %p149 = scmp.ne.s32.totalorder %s134, %s148
      %p150 = scmp.eq.s32.totalorder %s28, 0
      %p151 = por %p149, %p150
      %s153 = sadd.s32 %s152, 1
      %p156 = scmp.eq.s32.totalorder %s22, 7
      %p157 = scmp.ne.s32.totalorder %s152, %s154
      %p158 = scmp.eq.s32.totalorder %s22, 0
      %p159 = por %p157, %p158
      %p160 = scmp.ne.s32.totalorder %s152, %s154
      %p161 = scmp.eq.s32.totalorder %s27, 7
      %p162 = por %p160, %p161
      %p163 = scmp.ne.s32.totalorder %s154, %s155
      %p164 = scmp.eq.s32.totalorder %s27, 0
      %p165 = por %p163, %p164
      %p166 = scmp.ne.s32.totalorder %s154, %s155
      %p167 = scmp.eq.s32.totalorder %s28, 7
      %p168 = por %p166, %p167
      %p170 = scmp.ne.s32.totalorder %s155, %s169
      %p171 = scmp.eq.s32.totalorder %s28, 0
      %p172 = por %p170, %p171
      %s174 = sadd.s32 %s173, 1
      %p177 = scmp.eq.s32.totalorder %s22, 7
      %p178 = scmp.ne.s32.totalorder %s173, %s175
      %p179 = scmp.eq.s32.totalorder %s22, 0
      %p180 = por %p178, %p179
      %p181 = scmp.ne.s32.totalorder %s173, %s175
      %p182 = scmp.eq.s32.totalorder %s27, 7
      %p183 = por %p181, %p182
      %p184 = scmp.ne.s32.totalorder %s175, %s176
      %p185 = scmp.eq.s32.totalorder %s27, 0
      %p186 = por %p184, %p185
      %p187 = scmp.ne.s32.totalorder %s175, %s176
      %p188 = scmp.eq.s32.totalorder %s28, 7
      %p189 = por %p187, %p188
      %p191 = scmp.ne.s32.totalorder %s176, %s190
      %p192 = scmp.eq.s32.totalorder %s28, 0
      %p193 = por %p191, %p192
      %s195 = sadd.s32 %s194, 1
      %p198 = scmp.eq.s32.totalorder %s22, 7
      %p199 = scmp.ne.s32.totalorder %s194, %s196
      %p200 = scmp.eq.s32.totalorder %s22, 0
      %p201 = por %p199, %p200
      %p202 = scmp.ne.s32.totalorder %s194, %s196
      %p203 = scmp.eq.s32.totalorder %s27, 7
      %p204 = por %p202, %p203
      %p205 = scmp.ne.s32.totalorder %s196, %s197
      %p206 = scmp.eq.s32.totalorder %s27, 0
      %p207 = por %p205, %p206
      %p208 = scmp.ne.s32.totalorder %s196, %s197
      %p209 = scmp.eq.s32.totalorder %s28, 7
      %p210 = por %p208, %p209
      %p212 = scmp.ne.s32.totalorder %s197, %s211
      %p213 = scmp.eq.s32.totalorder %s28, 0
      %p214 = por %p212, %p213
      %s216 = sadd.s32 %s215, 1
      %p219 = scmp.eq.s32.totalorder %s22, 7
      %p220 = scmp.ne.s32.totalorder %s215, %s217
      %p221 = scmp.eq.s32.totalorder %s22, 0
      %p222 = por %p220, %p221
      %p223 = scmp.ne.s32.totalorder %s215, %s217
      %p224 = scmp.eq.s32.totalorder %s27, 7
      %p225 = por %p223, %p224
      %p226 = scmp.ne.s32.totalorder %s217, %s218
      %p227 = scmp.eq.s32.totalorder %s27, 0
      %p228 = por %p226, %p227
      %p229 = scmp.ne.s32.totalorder %s217, %s218
      %p230 = scmp.eq.s32.totalorder %s28, 7
      %p231 = por %p229, %p230
      %p233 = scmp.ne.s32.totalorder %s218, %s232
      %p234 = scmp.eq.s32.totalorder %s28, 0
      %p235 = por %p233, %p234
      %s237 = sadd.s32 %s236, 1
      %p240 = scmp.eq.s32.totalorder %s22, 7
      %p241 = scmp.ne.s32.totalorder %s236, %s238
      %p242 = scmp.eq.s32.totalorder %s22, 0
      %p243 = por %p241, %p242
      %p244 = scmp.ne.s32.totalorder %s236, %s238
      %p245 = scmp.eq.s32.totalorder %s27, 7
      %p246 = por %p244, %p245
      %p247 = scmp.ne.s32.totalorder %s238, %s239
      %p248 = scmp.eq.s32.totalorder %s27, 0
      %p249 = por %p247, %p248
      %p250 = scmp.ne.s32.totalorder %s238, %s239
      %p251 = scmp.eq.s32.totalorder %s28, 7
      %p252 = por %p250, %p251
      %p254 = scmp.ne.s32.totalorder %s239, %s253
      %p255 = scmp.eq.s32.totalorder %s28, 0
      %p256 = por %p254, %p255
      %s257 = ssub.s32 %s29, %s41
      %s258 = ssub.s32 %s30, %s37
      %s259 = sor.u32 %s257, %s258
      %p260 = scmp.eq.s32.totalorder %s259, 0
      %s262 = sadd.s32 %s261, 1
      %s263 = scalar_select %p260, %s261, %s262
      %p266 = pneg %p260
      %p267 = scmp.eq.s32.totalorder %s22, 7
      %p268 = por %p266, %p267
      %p269 = scmp.ne.s32.totalorder %s261, %s264
      %p270 = scmp.eq.s32.totalorder %s22, 0
      %p271 = por %p269, %p270
      %p272 = scmp.ne.s32.totalorder %s261, %s264
      %p273 = scmp.eq.s32.totalorder %s27, 7
      %p274 = por %p272, %p273
      %p275 = scmp.ne.s32.totalorder %s264, %s265
      %p276 = scmp.eq.s32.totalorder %s27, 0
      %p277 = por %p275, %p276
      %p278 = scmp.ne.s32.totalorder %s264, %s265
      %p279 = scmp.eq.s32.totalorder %s28, 7
      %p280 = por %p278, %p279
      %p282 = scmp.ne.s32.totalorder %s265, %s281
      %p283 = scmp.eq.s32.totalorder %s28, 0
      %p284 = por %p282, %p283
      %p285 = scmp.le.s32.totalorder 1, %s22
      %p286 = scmp.lt.s32.totalorder %s22, 9
      %p287 = pnand %p285, %p286
      %p288 = pneg %p287
      // Predicated region
      $region9: #{tpu_custom_call.1} parent=5 // pred_check
        _
      $region10: #{tpu_custom_call.1} parent=5 // pred_check_branch
        %290 = sbr.rel (%p287) target = $region12
      $region11: #{tpu_custom_call.1} parent=5 // pred_region
        %s291 = ssub.s32 %s22, 1
        // Predicated region
        $region13: #{tpu_custom_call.1} parent=11 // pred_check
          %p292 = pneg %p81
        $region14: #{tpu_custom_call.1} parent=11 // pred_check_branch
          %294 = sbr.rel (%p292) target = $region16
        $region15: #{tpu_custom_call.1} parent=11 // pred_region
          _
        $region16: #{tpu_custom_call.1} parent=11 // pred_fallthru
          _
        // Predicated region
        $region17: #{tpu_custom_call.1} parent=11 // pred_check
          %p295 = pneg %p102
        $region18: #{tpu_custom_call.1} parent=11 // pred_check_branch
          %297 = sbr.rel (%p295) target = $region20
        $region19: #{tpu_custom_call.1} parent=11 // pred_region
          _
        $region20: #{tpu_custom_call.1} parent=11 // pred_fallthru
          _
        // Predicated region
        $region21: #{tpu_custom_call.1} parent=11 // pred_check
          %p298 = pneg %p123
        $region22: #{tpu_custom_call.1} parent=11 // pred_check_branch
          %300 = sbr.rel (%p298) target = $region24
        $region23: #{tpu_custom_call.1} parent=11 // pred_region
          _
        $region24: #{tpu_custom_call.1} parent=11 // pred_fallthru
          _
        // Predicated region
        $region25: #{tpu_custom_call.1} parent=11 // pred_check
          %p301 = pneg %p144
        $region26: #{tpu_custom_call.1} parent=11 // pred_check_branch
          %303 = sbr.rel (%p301) target = $region28
        $region27: #{tpu_custom_call.1} parent=11 // pred_region
          _
        $region28: #{tpu_custom_call.1} parent=11 // pred_fallthru
          _
        // Predicated region
        $region29: #{tpu_custom_call.1} parent=11 // pred_check
          %p304 = pneg %p165
        $region30: #{tpu_custom_call.1} parent=11 // pred_check_branch
          %306 = sbr.rel (%p304) target = $region32
        $region31: #{tpu_custom_call.1} parent=11 // pred_region
          _
        $region32: #{tpu_custom_call.1} parent=11 // pred_fallthru
          _
        // Predicated region
        $region33: #{tpu_custom_call.1} parent=11 // pred_check
          %p307 = pneg %p186
        $region34: #{tpu_custom_call.1} parent=11 // pred_check_branch
          %309 = sbr.rel (%p307) target = $region36
        $region35: #{tpu_custom_call.1} parent=11 // pred_region
          _
        $region36: #{tpu_custom_call.1} parent=11 // pred_fallthru
          _
        // Predicated region
        $region37: #{tpu_custom_call.1} parent=11 // pred_check
          %p310 = pneg %p207
        $region38: #{tpu_custom_call.1} parent=11 // pred_check_branch
          %312 = sbr.rel (%p310) target = $region40
        $region39: #{tpu_custom_call.1} parent=11 // pred_region
          _
        $region40: #{tpu_custom_call.1} parent=11 // pred_fallthru
          _
        // Predicated region
        $region41: #{tpu_custom_call.1} parent=11 // pred_check
          %p313 = pneg %p228
        $region42: #{tpu_custom_call.1} parent=11 // pred_check_branch
          %315 = sbr.rel (%p313) target = $region44
        $region43: #{tpu_custom_call.1} parent=11 // pred_region
          _
        $region44: #{tpu_custom_call.1} parent=11 // pred_fallthru
          _
        // Predicated region
        $region45: #{tpu_custom_call.1} parent=11 // pred_check
          %p316 = pneg %p249
        $region46: #{tpu_custom_call.1} parent=11 // pred_check_branch
          %318 = sbr.rel (%p316) target = $region48
        $region47: #{tpu_custom_call.1} parent=11 // pred_region
          _
        $region48: #{tpu_custom_call.1} parent=11 // pred_fallthru
          _
      $region12: #{tpu_custom_call.1} parent=5 // pred_fallthru
        _
      %p319 = scmp.lt.s32.totalorder %s22, 8
      // Predicated region
      $region49: #{tpu_custom_call.1} parent=5 // pred_check
        %p320 = pneg %p319
      $region50: #{tpu_custom_call.1} parent=5 // pred_check_branch
        %322 = sbr.rel (%p320) target = $region52
      $region51: #{tpu_custom_call.1} parent=5 // pred_region
        // Predicated region
        $region53: #{tpu_custom_call.1} parent=51 // pred_check
          %p323 = pneg %p54
        $region54: #{tpu_custom_call.1} parent=51 // pred_check_branch
          %325 = sbr.rel (%p323) target = $region56
        $region55: #{tpu_custom_call.1} parent=51 // pred_region
          %s326 = sand.u32 %s44, 1
          %s327 = scalar_lea.sflag [#allocation4], %s326
          %s328 = sand.u32 %s44, 1
          %s329 = smul.addr %s328, 128
          %s330 = scalar_lea.vmem [#allocation3], %s329
          %s332 = ssub.s32 2048, 2048
          %333 = vsyncadd %s327, %s332
          %s334 = smul.addr %s29, 32
          %s335 = smul.addr %s334, 64
          %s336 = scalar_lea.hbm %s0, %s335
          %s337 = sshll.u32 %s330, 4
          %s338 = int_to_ptr.vmem [resolvable:$true] %s337
          %343 = dma.hbm_to_vmem [thread:$0]  %s336, 2048, %s338, %s327, 64, 64, 4
        $region56: #{tpu_custom_call.1} parent=51 // pred_fallthru
          _
      $region52: #{tpu_custom_call.1} parent=5 // pred_fallthru
        _
      %p344 = scmp.le.s32.totalorder 1, %s22
      %p345 = scmp.lt.s32.totalorder %s22, 9
      %p346 = pnand %p344, %p345
      %p347 = pneg %p346
      // Predicated region
      $region57: #{tpu_custom_call.1} parent=5 // pred_check
        _
      $region58: #{tpu_custom_call.1} parent=5 // pred_check_branch
        %349 = sbr.rel (%p346) target = $region60
      $region59: #{tpu_custom_call.1} parent=5 // pred_region
        %s350 = ssub.s32 %s22, 1
        %s351 = sand.u32 %s47, 1
        %s352 = scalar_lea.sflag [#allocation4], %s351
        %s353 = sand.u32 %s47, 1
        %s354 = smul.addr %s353, 128
        %s355 = scalar_lea.vmem [#allocation3], %s354
        // Predicated region
        $region61: #{tpu_custom_call.1} parent=59 // pred_check
          %p356 = pneg %p60
        $region62: #{tpu_custom_call.1} parent=59 // pred_check_branch
          %358 = sbr.rel (%p356) target = $region64
        $region63: #{tpu_custom_call.1} parent=59 // pred_region
          %359 = dma.done %s352, 2048
        $region64: #{tpu_custom_call.1} parent=59 // pred_fallthru
          _
        %s360 = sand.u32 %s47, 1
        %s361 = scalar_lea.sflag [#allocation4], %s360
        %s362 = sand.u32 %s47, 1
        %s363 = smul.addr %s362, 128
        %s364 = scalar_lea.vmem [#allocation3], %s363
        %p365 = pneg %p60
        %p366 = pneg %p57
        %p367 = pneg %p81
        %p368 = pneg %p78
        %p369 = pneg %p102
        %p370 = pneg %p99
        %p371 = pneg %p123
        %p372 = pneg %p120
        %p373 = pneg %p144
        %p374 = pneg %p141
        %p375 = pneg %p165
        %p376 = pneg %p162
        %p377 = pneg %p186
        %p378 = pneg %p183
        %p379 = pneg %p207
        %p380 = pneg %p204
        %p381 = pneg %p228
        %p382 = pneg %p225
        %p383 = pneg %p249
        %p384 = pneg %p246
        %p385 = pneg %p277
        %p386 = pneg %p274
        %s387 = sand.u32 %s264, 1
        %s388 = scalar_lea.sflag [#allocation5], %s387
        %s389 = sand.u32 %s264, 1
        %s390 = smul.addr %s389, 64
        %s391 = scalar_lea.vmem [#allocation6], %s390
        %s392 = smul.u32 4, %s32
        %vm394 = vcmask 24576
        %vm395 = vsmask.f32 256
        %vm396 = vmand %vm394, %vm395
        %v397 = vld [vmem:[#allocation2] sm:$0x1]
        %v398 = vsel %vm396, 0, %v397
        %399 = vst [vmem:[#allocation2] sm:$0x1] %v398
        %v400 = vld [vmem:[#allocation2 + $0xc] sm:$0x1]
        %v401 = vsel %vm396, 0, %v400
        %402 = vst [vmem:[#allocation2 + $0xc] sm:$0x1] %v401
        %v403 = vld [vmem:[#allocation2 + $0x18] sm:$0x1]
        %v404 = vsel %vm396, 0, %v403
        %405 = vst [vmem:[#allocation2 + $0x18] sm:$0x1] %v404
        %v406 = vld [vmem:[#allocation2 + $0x24] sm:$0x1]
        %v407 = vsel %vm396, 0, %v406
        %408 = vst [vmem:[#allocation2 + $0x24] sm:$0x1] %v407
        %v409 = vld [vmem:[#allocation2 + $0x30] sm:$0x1]
        %v410 = vsel %vm396, 0, %v409
        %411 = vst [vmem:[#allocation2 + $0x30] sm:$0x1] %v410
        %v412 = vld [vmem:[#allocation2 + $0x3c] sm:$0x1]
        %v413 = vsel %vm396, 0, %v412
        %414 = vst [vmem:[#allocation2 + $0x3c] sm:$0x1] %v413
        %v415 = vld [vmem:[#allocation2 + $0x48] sm:$0x1]
        %v416 = vsel %vm396, 0, %v415
        %417 = vst [vmem:[#allocation2 + $0x48] sm:$0x1] %v416
        %v418 = vld [vmem:[#allocation2 + $0x54] sm:$0x1]
        %v419 = vsel %vm396, 0, %v418
        %420 = vst [vmem:[#allocation2 + $0x54] sm:$0x1] %v419
        %vm421 = vsmask.f32 7938
        %vm422 = vmand %vm394, %vm421
        %v423 = vld [vmem:[#allocation2 + $0x8] sm:$0x1]
        %v424 = vsel %vm422, 0, %v423
        %425 = vst [vmem:[#allocation2 + $0x8] sm:$0x1] %v424
        %v426 = vld [vmem:[#allocation2 + $0x14] sm:$0x1]
        %v427 = vsel %vm422, 0, %v426
        %428 = vst [vmem:[#allocation2 + $0x14] sm:$0x1] %v427
        %v429 = vld [vmem:[#allocation2 + $0x20] sm:$0x1]
        %v430 = vsel %vm422, 0, %v429
        %431 = vst [vmem:[#allocation2 + $0x20] sm:$0x1] %v430
        %v432 = vld [vmem:[#allocation2 + $0x2c] sm:$0x1]
        %v433 = vsel %vm422, 0, %v432
        %434 = vst [vmem:[#allocation2 + $0x2c] sm:$0x1] %v433
        %v435 = vld [vmem:[#allocation2 + $0x38] sm:$0x1]
        %v436 = vsel %vm422, 0, %v435
        %437 = vst [vmem:[#allocation2 + $0x38] sm:$0x1] %v436
        %v438 = vld [vmem:[#allocation2 + $0x44] sm:$0x1]
        %v439 = vsel %vm422, 0, %v438
        %440 = vst [vmem:[#allocation2 + $0x44] sm:$0x1] %v439
        %v441 = vld [vmem:[#allocation2 + $0x50] sm:$0x1]
        %v442 = vsel %vm422, 0, %v441
        %443 = vst [vmem:[#allocation2 + $0x50] sm:$0x1] %v442
        %v444 = vld [vmem:[#allocation2 + $0x5c] sm:$0x1]
        %v445 = vsel %vm422, 0, %v444
        %446 = vst [vmem:[#allocation2 + $0x5c] sm:$0x1] %v445
        %s447 = smul.u32 %s32, 4
        %s448 = ssub.s32 %s447, 1
        %p449 = scmp.gt.s32.totalorder %s448, 0
        %s450 = scalar_select %p449, %s448, 0
        %p451 = scmp.lt.s32.totalorder %s450, 10
        %s452 = scalar_select %p451, %s450, 10
        %s453 = smul.u32 %s452, 2
        %s454 = smul.addr %s453, 4
        %s455 = scalar_lea.vmem %s355, %s454 [#allocation3]
        %v456 = vld [vmem:[%s455] sm:$0xf]
        %v457 = vld [vmem:[%s455 + $0x4] sm:$0xf]
        %v458 = vld [vmem:[%s455 + $0x8] sm:$0xf]
        %v459 = vld [vmem:[%s455 + $0xc] sm:$0xf]
        %v460 = vld [vmem:[%s455 + $0x10] sm:$0xf]
        %v461 = vld [vmem:[%s455 + $0x14] sm:$0xf]
        %v462 = vld [vmem:[%s455 + $0x18] sm:$0xf]
        %v463 = vld [vmem:[%s455 + $0x1c] sm:$0xf]
        %v464 = vld [vmem:[%s455 + $0x20] sm:$0xf]
        %v465 = vld [vmem:[%s455 + $0x24] sm:$0xf]
        %v466 = vld [vmem:[%s455 + $0x28] sm:$0xf]
        %v467 = vld [vmem:[%s455 + $0x2c] sm:$0xf]
        %s468 = ssub.s32 %s452, %s447
        %s469 = sadd.s32 %s468, 2
        %v470 = vld [vmem:[%s1] sm:$0xf]
        %v471 = vld [vmem:[%s1 + $0x4] sm:$0xf]
        %v484 = vunpack.c.l.b16 %v456
        %v485 = vunpack.c.l.b16 %v457
        %v486 = vunpack.c.l.b16 %v458
        %v487 = vunpack.c.l.b16 %v459
        %v488 = vunpack.c.l.b16 %v460
        %v489 = vunpack.c.l.b16 %v461
        %v490 = vunpack.c.l.b16 %v462
        %v491 = vunpack.c.l.b16 %v463
        %v492 = vunpack.c.l.b16 %v464
        %v493 = vunpack.c.l.b16 %v465
        %v494 = vunpack.c.l.b16 %v466
        %v495 = vunpack.c.l.b16 %v467
        %v496 = vpack.c.b16 %v485, %v484
        %v497 = vpack.c.b16 %v487, %v486
        %v498 = vpack.c.b16 %v489, %v488
        %v499 = vpack.c.b16 %v491, %v490
        %v500 = vpack.c.b16 %v493, %v492
        %v501 = vpack.c.b16 %v495, %v494
        %v504 = vunpack.c.l.b16 %v470
        %v505 = vunpack.c.l.b16 %v471
        %v506 = vpack.c.b16 %v505, %v504
        %vm508 = vcmask 130048
        %v510 = vsel %vm508, %v496, 0
        %v513 = vsel %vm508, %v497, 0
        %v516 = vsel %vm508, %v498, 0
        %v519 = vsel %vm508, %v499, 0
        %v522 = vsel %vm508, %v500, 0
        %v525 = vsel %vm508, %v501, 0
        %527 = vmatprep.subr.bf16.mxu0 0
        %528 = vmatpush1.bf16.msra.mxu0 0
        %529 = vmatprep.subr.bf16.mxu0 0
        %530 = vmatpush1.bf16.msra.mxu0 0
        %531 = vmatprep.subr.bf16.mxu0 0
        %532 = vmatpush1.bf16.msra.mxu0 0
        %533 = vmatprep.subr.bf16.mxu0 0
        %534 = vmatpush1.bf16.msra.mxu0 0
        %535 = vmatprep.subr.bf16.mxu0 0
        %536 = vmatpush1.bf16.msra.mxu0 0
        %537 = vmatprep.subr.bf16.mxu0 0
        %538 = vmatpush1.bf16.msra.mxu0 0
        %539 = vmatprep.subr.bf16.mxu0 0
        %540 = vmatpush1.bf16.msra.mxu0 0
        %541 = vmatprep.subr.bf16.mxu0 0
        %542 = vmatpush1.bf16.msra.mxu0 %v506
        %543 = vmatprep.subr.bf16.mxu0 0
        %544 = vmatpush2.bf16.msra.mxu0 0
        %545 = vmatprep.subr.bf16.mxu0 0
        %546 = vmatpush2.bf16.msra.mxu0 0
        %547 = vmatprep.subr.bf16.mxu0 0
        %548 = vmatpush2.bf16.msra.mxu0 0
        %549 = vmatprep.subr.bf16.mxu0 0
        %550 = vmatpush2.bf16.msra.mxu0 0
        %551 = vmatprep.subr.bf16.mxu0 0
        %552 = vmatpush2.bf16.msra.mxu0 0
        %553 = vmatprep.subr.bf16.mxu0 0
        %554 = vmatpush2.bf16.msra.mxu0 0
        %555 = vmatprep.subr.bf16.mxu0 0
        %556 = vmatpush2.bf16.msra.mxu0 0
        %557 = vmatprep.subr.bf16.mxu0 0
        %558 = vmatpush2.bf16.msra.mxu0 0
        %559 = vmatprep.mubr.bf16.mxu0 0
        %560 = vmatmul.mubr.bf16.gmra.mxu0 %v510
        %v561 = vpop.f32.mrf.mxu0
        %v562 = vadd.f32 0.0, %v561
        %v563 = vpop.f32.mrf.mxu0
        %v564 = vpop.f32.mrf.mxu0
        %v565 = vadd.f32 0.0, %v564
        %v566 = vpop.f32.mrf.mxu0
        %567 = vmatprep.mubr.bf16.mxu0 0
        %568 = vmatmul.mubr.bf16.gmra.mxu0 %v513
        %v569 = vpop.f32.mrf.mxu0
        %v570 = vadd.f32 0.0, %v569
        %v571 = vpop.f32.mrf.mxu0
        %v572 = vpop.f32.mrf.mxu0
        %v573 = vadd.f32 0.0, %v572
        %v574 = vpop.f32.mrf.mxu0
        %575 = vmatprep.mubr.bf16.mxu0 0
        %576 = vmatmul.mubr.bf16.gmra.mxu0 %v516
        %v577 = vpop.f32.mrf.mxu0
        %v578 = vadd.f32 0.0, %v577
        %v579 = vpop.f32.mrf.mxu0
        %v580 = vpop.f32.mrf.mxu0
        %v581 = vadd.f32 0.0, %v580
        %v582 = vpop.f32.mrf.mxu0
        %583 = vmatprep.mubr.bf16.mxu0 0
        %584 = vmatmul.mubr.bf16.gmra.mxu0 %v519
        %v585 = vpop.f32.mrf.mxu0
        %v586 = vadd.f32 0.0, %v585
        %v587 = vpop.f32.mrf.mxu0
        %v588 = vpop.f32.mrf.mxu0
        %v589 = vadd.f32 0.0, %v588
        %v590 = vpop.f32.mrf.mxu0
        %591 = vmatprep.mubr.bf16.mxu0 0
        %592 = vmatmul.mubr.bf16.gmra.mxu0 %v522
        %v593 = vpop.f32.mrf.mxu0
        %v594 = vadd.f32 0.0, %v593
        %v595 = vpop.f32.mrf.mxu0
        %v596 = vpop.f32.mrf.mxu0
        %v597 = vadd.f32 0.0, %v596
        %v598 = vpop.f32.mrf.mxu0
        %599 = vmatprep.mubr.bf16.mxu0 0
        %600 = vmatmul.mubr.bf16.gmra.mxu0 %v525
        %v601 = vpop.f32.mrf.mxu0
        %v602 = vadd.f32 0.0, %v601
        %v603 = vpop.f32.mrf.mxu0
        %v604 = vpop.f32.mrf.mxu0
        %v605 = vadd.f32 0.0, %v604
        %v606 = vpop.f32.mrf.mxu0
        %607 = vdwg.mxu0
        %v608 = vld [vmem:[%s4] sm:$0x1]
        %v610 = vlaneseq
        %v611 = vshrl.u32 %v610, 7
        %v612 = vsub.s32 0, %v611
        %v613 = vrot.slane %v608, %v612
        %v615 = vmul.f32 %v562, %v613
        %v616 = vmul.f32 %v565, %v613
        %v617 = vmul.f32 %v570, %v613
        %v618 = vmul.f32 %v573, %v613
        %v619 = vmul.f32 %v578, %v613
        %v620 = vmul.f32 %v581, %v613
        %v621 = vmul.f32 %v586, %v613
        %v622 = vmul.f32 %v589, %v613
        %v623 = vmul.f32 %v594, %v613
        %v624 = vmul.f32 %v597, %v613
        %v625 = vmul.f32 %v602, %v613
        %v626 = vmul.f32 %v605, %v613
        %v627 = vld [vmem:[%s5] sm:$0x1]
        %v629 = vlaneseq
        %v630 = vshrl.u32 %v629, 7
        %v631 = vsub.s32 0, %v630
        %v632 = vrot.slane %v627, %v631
        %v634 = vadd.f32 %v615, %v632
        %v635 = vadd.f32 %v616, %v632
        %v636 = vadd.f32 %v617, %v632
        %v637 = vadd.f32 %v618, %v632
        %v638 = vadd.f32 %v619, %v632
        %v639 = vadd.f32 %v620, %v632
        %v640 = vadd.f32 %v621, %v632
        %v641 = vadd.f32 %v622, %v632
        %v642 = vadd.f32 %v623, %v632
        %v643 = vadd.f32 %v624, %v632
        %v644 = vadd.f32 %v625, %v632
        %v645 = vadd.f32 %v626, %v632
        %v646 = vmax.f32 %v634, 0.0
        %v647 = vmax.f32 %v635, 0.0
        %v648 = vmax.f32 %v636, 0.0
        %v649 = vmax.f32 %v637, 0.0
        %v650 = vmax.f32 %v638, 0.0
        %v651 = vmax.f32 %v639, 0.0
        %v652 = vmax.f32 %v640, 0.0
        %v653 = vmax.f32 %v641, 0.0
        %v654 = vmax.f32 %v642, 0.0
        %v655 = vmax.f32 %v643, 0.0
        %v656 = vmax.f32 %v644, 0.0
        %v657 = vmax.f32 %v645, 0.0
        %v658 = vpack.c.bf16 %v647, %v646
        %v659 = vpack.c.bf16 %v649, %v648
        %v660 = vpack.c.bf16 %v651, %v650
        %v661 = vpack.c.bf16 %v653, %v652
        %v662 = vpack.c.bf16 %v655, %v654
        %v663 = vpack.c.bf16 %v657, %v656
        %v670 = vunpack.c.l.b16 %v658
        %v671 = vunpack.c.h.b16 %v658
        %v672 = vunpack.c.l.b16 %v659
        %v673 = vunpack.c.h.b16 %v659
        %v674 = vunpack.c.l.b16 %v660
        %v675 = vunpack.c.h.b16 %v660
        %v676 = vunpack.c.l.b16 %v661
        %v677 = vunpack.c.h.b16 %v661
        %v678 = vunpack.c.l.b16 %v662
        %v679 = vunpack.c.h.b16 %v662
        %v680 = vunpack.c.l.b16 %v663
        %v681 = vunpack.c.h.b16 %v663
        %v682 = vpack.c.b16 %v670, %v670
        %v683 = vpack.c.b16 %v671, %v671
        %v684 = vpack.c.b16 %v672, %v672
        %v685 = vpack.c.b16 %v673, %v673
        %v686 = vpack.c.b16 %v674, %v674
        %v687 = vpack.c.b16 %v675, %v675
        %v688 = vpack.c.b16 %v676, %v676
        %v689 = vpack.c.b16 %v677, %v677
        %v690 = vpack.c.b16 %v678, %v678
        %v691 = vpack.c.b16 %v679, %v679
        %v692 = vpack.c.b16 %v680, %v680
        %v693 = vpack.c.b16 %v681, %v681
        %vm694 = vsmask.f32 4368
        %vm695 = vmor %vm395, %vm694
        %v697 = vshrl.u32 %v682, 16
        %v699 = vrot.slane %v697, 7
        %v700 = vshll.u32 %v682, 16
        %v702 = vor.u32 %v699, %v700
        %v703 = vrot.slane %v699, 4
        %v705 = vshrl.u32 %v683, 16
        %v707 = vrot.slane %v705, 7
        %v708 = vshll.u32 %v683, 16
        %v710 = vor.u32 %v707, %v708
        %v711 = vsel %vm695, %v703, %v710
        %v712 = vrot.slane %v707, 4
        %v714 = vshrl.u32 %v684, 16
        %v716 = vrot.slane %v714, 7
        %v717 = vshll.u32 %v684, 16
        %v719 = vor.u32 %v716, %v717
        %v720 = vrot.slane %v716, 4
        %v722 = vshrl.u32 %v685, 16
        %v724 = vrot.slane %v722, 7
        %v725 = vshll.u32 %v685, 16
        %v727 = vor.u32 %v724, %v725
        %v728 = vsel %vm695, %v720, %v727
        %v729 = vrot.slane %v724, 4
        %v731 = vshrl.u32 %v686, 16
        %v733 = vrot.slane %v731, 7
        %v734 = vshll.u32 %v686, 16
        %v736 = vor.u32 %v733, %v734
        %v737 = vrot.slane %v733, 4
        %v739 = vshrl.u32 %v687, 16
        %v741 = vrot.slane %v739, 7
        %v742 = vshll.u32 %v687, 16
        %v744 = vor.u32 %v741, %v742
        %v745 = vsel %vm695, %v737, %v744
        %v746 = vrot.slane %v741, 4
        %v748 = vshrl.u32 %v688, 16
        %v750 = vrot.slane %v748, 7
        %v751 = vshll.u32 %v688, 16
        %v753 = vor.u32 %v750, %v751
        %v754 = vrot.slane %v750, 4
        %v756 = vshrl.u32 %v689, 16
        %v758 = vrot.slane %v756, 7
        %v759 = vshll.u32 %v689, 16
        %v761 = vor.u32 %v758, %v759
        %v762 = vsel %vm695, %v754, %v761
        %v763 = vrot.slane %v758, 4
        %v765 = vshrl.u32 %v690, 16
        %v767 = vrot.slane %v765, 7
        %v768 = vshll.u32 %v690, 16
        %v770 = vor.u32 %v767, %v768
        %v771 = vrot.slane %v767, 4
        %v773 = vshrl.u32 %v691, 16
        %v775 = vrot.slane %v773, 7
        %v776 = vshll.u32 %v691, 16
        %v778 = vor.u32 %v775, %v776
        %v779 = vsel %vm695, %v771, %v778
        %v780 = vrot.slane %v775, 4
        %v782 = vshrl.u32 %v692, 16
        %v784 = vrot.slane %v782, 7
        %v785 = vshll.u32 %v692, 16
        %v787 = vor.u32 %v784, %v785
        %v788 = vrot.slane %v784, 4
        %v790 = vshrl.u32 %v693, 16
        %v792 = vrot.slane %v790, 7
        %v793 = vshll.u32 %v693, 16
        %v795 = vor.u32 %v792, %v793
        %v796 = vsel %vm695, %v788, %v795
        %v797 = vrot.slane %v792, 4
        %s816 = smul.u32 %s469, 3
        %s817 = smul.addr %s816, 4
        %s818 = scalar_lea.vmem [#allocation2], %s817
        %vm819 = vcmask 27648
        %vm820 = vmand %vm819, %vm421
        %v821 = vld [vmem:[%s818] sm:$0xf]
        %v822 = vsel %vm820, %v702, %v821
        %823 = vst [vmem:[%s818] sm:$0xf] %v822
        %vm824 = vcmask 27648
        %825 = vst.msk [vmem:[%s818 + $0x4] sm:$0xf] %vm824, %v711
        %v826 = vld [vmem:[%s818 + $0x8] sm:$0x1]
        %v827 = vsel %vm396, %v712, %v826
        %828 = vst [vmem:[%s818 + $0x8] sm:$0x1] %v827
        %v829 = vld [vmem:[%s818 + $0xc] sm:$0xf]
        %v830 = vsel %vm820, %v719, %v829
        %831 = vst [vmem:[%s818 + $0xc] sm:$0xf] %v830
        %832 = vst.msk [vmem:[%s818 + $0x10] sm:$0xf] %vm824, %v728
        %v833 = vld [vmem:[%s818 + $0x14] sm:$0x1]
        %v834 = vsel %vm396, %v729, %v833
        %835 = vst [vmem:[%s818 + $0x14] sm:$0x1] %v834
        %v836 = vld [vmem:[%s818 + $0x18] sm:$0xf]
        %v837 = vsel %vm820, %v736, %v836
        %838 = vst [vmem:[%s818 + $0x18] sm:$0xf] %v837
        %839 = vst.msk [vmem:[%s818 + $0x1c] sm:$0xf] %vm824, %v745
        %v840 = vld [vmem:[%s818 + $0x20] sm:$0x1]
        %v841 = vsel %vm396, %v746, %v840
        %842 = vst [vmem:[%s818 + $0x20] sm:$0x1] %v841
        %v843 = vld [vmem:[%s818 + $0x24] sm:$0xf]
        %v844 = vsel %vm820, %v753, %v843
        %845 = vst [vmem:[%s818 + $0x24] sm:$0xf] %v844
        %846 = vst.msk [vmem:[%s818 + $0x28] sm:$0xf] %vm824, %v762
        %v847 = vld [vmem:[%s818 + $0x2c] sm:$0x1]
        %v848 = vsel %vm396, %v763, %v847
        %849 = vst [vmem:[%s818 + $0x2c] sm:$0x1] %v848
        %v850 = vld [vmem:[%s818 + $0x30] sm:$0xf]
        %v851 = vsel %vm820, %v770, %v850
        %852 = vst [vmem:[%s818 + $0x30] sm:$0xf] %v851
        %853 = vst.msk [vmem:[%s818 + $0x34] sm:$0xf] %vm824, %v779
        %v854 = vld [vmem:[%s818 + $0x38] sm:$0x1]
        %v855 = vsel %vm396, %v780, %v854
        %856 = vst [vmem:[%s818 + $0x38] sm:$0x1] %v855
        %v857 = vld [vmem:[%s818 + $0x3c] sm:$0xf]
        %v858 = vsel %vm820, %v787, %v857
        %859 = vst [vmem:[%s818 + $0x3c] sm:$0xf] %v858
        %860 = vst.msk [vmem:[%s818 + $0x40] sm:$0xf] %vm824, %v796
        %v861 = vld [vmem:[%s818 + $0x44] sm:$0x1]
        %v862 = vsel %vm396, %v797, %v861
        %863 = vst [vmem:[%s818 + $0x44] sm:$0x1] %v862
        %p864 = scmp.eq.s32.totalorder %s32, 0
        // Predicated region
        $region65: #{tpu_custom_call.1} parent=59 // pred_check
          %p865 = pneg %p864
        $region66: #{tpu_custom_call.1} parent=59 // pred_check_branch
          %867 = sbr.rel (%p865) target = $region68
        $region67: #{tpu_custom_call.1} parent=59 // pred_region
          %s868 = scalar_lea.vmem [#allocation2], 12
          %869 = vst.msk [vmem:[%s868] sm:$0xf] %vm824, 0
          %870 = vst.msk [vmem:[%s868 + $0x4] sm:$0xf] %vm824, 0
          %vm871 = vcmask 24576
          %872 = vst.msk [vmem:[%s868 + $0x8] sm:$0x1] %vm871, 0
        $region68: #{tpu_custom_call.1} parent=59 // pred_fallthru
          _
        %p873 = scmp.eq.s32.totalorder %s32, 3
        // Predicated region
        $region69: #{tpu_custom_call.1} parent=59 // pred_check
          %p874 = pneg %p873
        $region70: #{tpu_custom_call.1} parent=59 // pred_check_branch
          %876 = sbr.rel (%p874) target = $region72
        $region71: #{tpu_custom_call.1} parent=59 // pred_region
          %s877 = scalar_lea.vmem [#allocation2], 72
          %878 = vst.msk [vmem:[%s877] sm:$0xf] %vm824, 0
          %879 = vst.msk [vmem:[%s877 + $0x4] sm:$0xf] %vm824, 0
          %vm880 = vcmask 24576
          %881 = vst.msk [vmem:[%s877 + $0x8] sm:$0x1] %vm880, 0
        $region72: #{tpu_custom_call.1} parent=59 // pred_fallthru
          _
        %s882 = scalar_lea.vmem [#allocation2], 12
        %v883 = vld [vmem:[%s882] sm:$0xf]
        %v884 = vld [vmem:[%s882 + $0x4] sm:$0xf]
        %v885 = vld [vmem:[%s882 + $0xc] sm:$0xf]
        %v886 = vld [vmem:[%s882 + $0x10] sm:$0xf]
        %v887 = vld [vmem:[%s882 + $0x18] sm:$0xf]
        %v888 = vld [vmem:[%s882 + $0x1c] sm:$0xf]
        %v889 = vld [vmem:[%s882 + $0x24] sm:$0xf]
        %v890 = vld [vmem:[%s882 + $0x28] sm:$0xf]
        %v891 = vld [vmem:[%s882 + $0x8] sm:$0x1]
        %v892 = vld [vmem:[%s882 + $0x14] sm:$0x1]
        %v893 = vld [vmem:[%s882 + $0x20] sm:$0x1]
        %v894 = vld [vmem:[%s882 + $0x2c] sm:$0x1]
        %v895 = vld [vmem:[%s882] sm:$0xe]
        %v896 = vld [vmem:[%s882 + $0xc] sm:$0xe]
        %v897 = vld [vmem:[%s882 + $0x18] sm:$0xe]
        %v898 = vld [vmem:[%s882 + $0x24] sm:$0xe]
        %v907 = vunpack.c.l.b16 %v883
        %v908 = vunpack.c.l.b16 %v884
        %v909 = vunpack.c.l.b16 %v885
        %v910 = vunpack.c.l.b16 %v886
        %v911 = vunpack.c.l.b16 %v887
        %v912 = vunpack.c.l.b16 %v888
        %v913 = vunpack.c.l.b16 %v889
        %v914 = vunpack.c.l.b16 %v890
        %v915 = vpack.c.b16 %v908, %v907
        %v916 = vpack.c.b16 %v910, %v909
        %v917 = vpack.c.b16 %v912, %v911
        %v918 = vpack.c.b16 %v914, %v913
        %v923 = vunpack.c.l.b16 %v891
        %v924 = vunpack.c.l.b16 %v892
        %v925 = vunpack.c.l.b16 %v893
        %v926 = vunpack.c.l.b16 %v894
        %v927 = vpack.c.b16 %v923, %v923
        %v928 = vpack.c.b16 %v924, %v924
        %v929 = vpack.c.b16 %v925, %v925
        %v930 = vpack.c.b16 %v926, %v926
        %vm931 = vsmask.f32 7424
        %v933 = vshrl.u32 %v915, 16
        %v935 = vshll.u32 %v915, 16
        %v937 = vrot.slane %v935, 1
        %v938 = vor.u32 %v933, %v937
        %v940 = vshll.u32 %v927, 16
        %v942 = vrot.slane %v940, 1
        %v943 = vsel %vm931, %v938, %v942
        %v945 = vshrl.u32 %v916, 16
        %v947 = vshll.u32 %v916, 16
        %v949 = vrot.slane %v947, 1
        %v950 = vor.u32 %v945, %v949
        %v952 = vshll.u32 %v928, 16
        %v954 = vrot.slane %v952, 1
        %v955 = vsel %vm931, %v950, %v954
        %v957 = vshrl.u32 %v917, 16
        %v959 = vshll.u32 %v917, 16
        %v961 = vrot.slane %v959, 1
        %v962 = vor.u32 %v957, %v961
        %v964 = vshll.u32 %v929, 16
        %v966 = vrot.slane %v964, 1
        %v967 = vsel %vm931, %v962, %v966
        %v969 = vshrl.u32 %v918, 16
        %v971 = vshll.u32 %v918, 16
        %v973 = vrot.slane %v971, 1
        %v974 = vor.u32 %v969, %v973
        %v976 = vshll.u32 %v930, 16
        %v978 = vrot.slane %v976, 1
        %v979 = vsel %vm931, %v974, %v978
        %980 = vrot.lane.b32.xlu0 %v943, 4
        %v981 = vpop.permute.xlu0 %980
        %982 = vrot.lane.b32.xlu0 %v955, 4
        %v983 = vpop.permute.xlu0 %982
        %984 = vrot.lane.b32.xlu0 %v967, 4
        %v985 = vpop.permute.xlu0 %984
        %986 = vrot.lane.b32.xlu0 %v979, 4
        %v987 = vpop.permute.xlu0 %986
        %v992 = vunpack.c.l.b16 %v895
        %v993 = vunpack.c.l.b16 %v896
        %v994 = vunpack.c.l.b16 %v897
        %v995 = vunpack.c.l.b16 %v898
        %v996 = vpack.c.b16 %v908, %v992
        %v997 = vpack.c.b16 %v910, %v993
        %v998 = vpack.c.b16 %v912, %v994
        %v999 = vpack.c.b16 %v914, %v995
        %vm1000 = vcmask 1046528
        %v1001 = vrot.slane %v996, 1
        %v1002 = vrot.slane %v927, 1
        %v1003 = vsel %vm1000, %v1001, %v1002
        %v1004 = vrot.slane %v997, 1
        %v1005 = vrot.slane %v928, 1
        %v1006 = vsel %vm1000, %v1004, %v1005
        %v1007 = vrot.slane %v998, 1
        %v1008 = vrot.slane %v929, 1
        %v1009 = vsel %vm1000, %v1007, %v1008
        %v1010 = vrot.slane %v999, 1
        %v1011 = vrot.slane %v930, 1
        %v1012 = vsel %vm1000, %v1010, %v1011
        %1013 = vrot.lane.b32.xlu0 %v1003, 8
        %v1014 = vpop.permute.xlu0 %1013
        %1015 = vrot.lane.b32.xlu0 %v1006, 8
        %v1016 = vpop.permute.xlu0 %1015
        %1017 = vrot.lane.b32.xlu0 %v1009, 8
        %v1018 = vpop.permute.xlu0 %1017
        %1019 = vrot.lane.b32.xlu0 %v1012, 8
        %v1020 = vpop.permute.xlu0 %1019
        %vm1021 = vcmask 31744
        %v1023 = vsel %vm1021, %v915, %v981
        %v1025 = vsel %vm1021, %v916, %v983
        %v1027 = vsel %vm1021, %v917, %v985
        %v1029 = vsel %vm1021, %v918, %v987
        %vm1030 = vcmask 64512
        %v1032 = vsel %vm1030, %v1023, %v1014
        %v1034 = vsel %vm1030, %v1025, %v1016
        %v1036 = vsel %vm1030, %v1027, %v1018
        %v1038 = vsel %vm1030, %v1029, %v1020
        %v1039 = vld [vmem:[%s2] sm:$0xf]
        %v1040 = vld [vmem:[%s2 + $0x4] sm:$0x3]
        %s1041 = scalar_lea.vmem [#allocation2], 24
        %v1042 = vld [vmem:[%s1041] sm:$0xf]
        %v1043 = vld [vmem:[%s1041 + $0x4] sm:$0xf]
        %v1044 = vld [vmem:[%s1041 + $0xc] sm:$0xf]
        %v1045 = vld [vmem:[%s1041 + $0x10] sm:$0xf]
        %v1046 = vld [vmem:[%s1041 + $0x18] sm:$0xf]
        %v1047 = vld [vmem:[%s1041 + $0x1c] sm:$0xf]
        %v1048 = vld [vmem:[%s1041 + $0x24] sm:$0xf]
        %v1049 = vld [vmem:[%s1041 + $0x28] sm:$0xf]
        %v1050 = vld [vmem:[%s1041 + $0x8] sm:$0x1]
        %v1051 = vld [vmem:[%s1041 + $0x14] sm:$0x1]
        %v1052 = vld [vmem:[%s1041 + $0x20] sm:$0x1]
        %v1053 = vld [vmem:[%s1041 + $0x2c] sm:$0x1]
        %v1054 = vld [vmem:[%s1041] sm:$0xe]
        %v1055 = vld [vmem:[%s1041 + $0xc] sm:$0xe]
        %v1056 = vld [vmem:[%s1041 + $0x18] sm:$0xe]
        %v1057 = vld [vmem:[%s1041 + $0x24] sm:$0xe]
        %v1066 = vunpack.c.l.b16 %v1042
        %v1067 = vunpack.c.l.b16 %v1043
        %v1068 = vunpack.c.l.b16 %v1044
        %v1069 = vunpack.c.l.b16 %v1045
        %v1070 = vunpack.c.l.b16 %v1046
        %v1071 = vunpack.c.l.b16 %v1047
        %v1072 = vunpack.c.l.b16 %v1048
        %v1073 = vunpack.c.l.b16 %v1049
        %v1074 = vpack.c.b16 %v1067, %v1066
        %v1075 = vpack.c.b16 %v1069, %v1068
        %v1076 = vpack.c.b16 %v1071, %v1070
        %v1077 = vpack.c.b16 %v1073, %v1072
        %v1082 = vunpack.c.l.b16 %v1050
        %v1083 = vunpack.c.l.b16 %v1051
        %v1084 = vunpack.c.l.b16 %v1052
        %v1085 = vunpack.c.l.b16 %v1053
        %v1086 = vpack.c.b16 %v1082, %v1082
        %v1087 = vpack.c.b16 %v1083, %v1083
        %v1088 = vpack.c.b16 %v1084, %v1084
        %v1089 = vpack.c.b16 %v1085, %v1085
        %v1091 = vshrl.u32 %v1074, 16
        %v1093 = vshll.u32 %v1074, 16
        %v1095 = vrot.slane %v1093, 1
        %v1096 = vor.u32 %v1091, %v1095
        %v1098 = vshll.u32 %v1086, 16
        %v1100 = vrot.slane %v1098, 1
        %v1101 = vsel %vm931, %v1096, %v1100
        %v1103 = vshrl.u32 %v1075, 16
        %v1105 = vshll.u32 %v1075, 16
        %v1107 = vrot.slane %v1105, 1
        %v1108 = vor.u32 %v1103, %v1107
        %v1110 = vshll.u32 %v1087, 16
        %v1112 = vrot.slane %v1110, 1
        %v1113 = vsel %vm931, %v1108, %v1112
        %v1115 = vshrl.u32 %v1076, 16
        %v1117 = vshll.u32 %v1076, 16
        %v1119 = vrot.slane %v1117, 1
        %v1120 = vor.u32 %v1115, %v1119
        %v1122 = vshll.u32 %v1088, 16
        %v1124 = vrot.slane %v1122, 1
        %v1125 = vsel %vm931, %v1120, %v1124
        %v1127 = vshrl.u32 %v1077, 16
        %v1129 = vshll.u32 %v1077, 16
        %v1131 = vrot.slane %v1129, 1
        %v1132 = vor.u32 %v1127, %v1131
        %v1134 = vshll.u32 %v1089, 16
        %v1136 = vrot.slane %v1134, 1
        %v1137 = vsel %vm931, %v1132, %v1136
        %1138 = vrot.lane.b32.xlu0 %v1101, 4
        %v1139 = vpop.permute.xlu0 %1138
        %1140 = vrot.lane.b32.xlu0 %v1113, 4
        %v1141 = vpop.permute.xlu0 %1140
        %1142 = vrot.lane.b32.xlu0 %v1125, 4
        %v1143 = vpop.permute.xlu0 %1142
        %1144 = vrot.lane.b32.xlu0 %v1137, 4
        %v1145 = vpop.permute.xlu0 %1144
        %v1150 = vunpack.c.l.b16 %v1054
        %v1151 = vunpack.c.l.b16 %v1055
        %v1152 = vunpack.c.l.b16 %v1056
        %v1153 = vunpack.c.l.b16 %v1057
        %v1154 = vpack.c.b16 %v1067, %v1150
        %v1155 = vpack.c.b16 %v1069, %v1151
        %v1156 = vpack.c.b16 %v1071, %v1152
        %v1157 = vpack.c.b16 %v1073, %v1153
        %v1158 = vrot.slane %v1154, 1
        %v1159 = vrot.slane %v1086, 1
        %v1160 = vsel %vm1000, %v1158, %v1159
        %v1161 = vrot.slane %v1155, 1
        %v1162 = vrot.slane %v1087, 1
        %v1163 = vsel %vm1000, %v1161, %v1162
        %v1164 = vrot.slane %v1156, 1
        %v1165 = vrot.slane %v1088, 1
        %v1166 = vsel %vm1000, %v1164, %v1165
        %v1167 = vrot.slane %v1157, 1
        %v1168 = vrot.slane %v1089, 1
        %v1169 = vsel %vm1000, %v1167, %v1168
        %1170 = vrot.lane.b32.xlu0 %v1160, 8
        %v1171 = vpop.permute.xlu0 %1170
        %1172 = vrot.lane.b32.xlu0 %v1163, 8
        %v1173 = vpop.permute.xlu0 %1172
        %1174 = vrot.lane.b32.xlu0 %v1166, 8
        %v1175 = vpop.permute.xlu0 %1174
        %1176 = vrot.lane.b32.xlu0 %v1169, 8
        %v1177 = vpop.permute.xlu0 %1176
        %v1179 = vsel %vm1021, %v1074, %v1139
        %v1181 = vsel %vm1021, %v1075, %v1141
        %v1183 = vsel %vm1021, %v1076, %v1143
        %v1185 = vsel %vm1021, %v1077, %v1145
        %v1187 = vsel %vm1030, %v1179, %v1171
        %v1189 = vsel %vm1030, %v1181, %v1173
        %v1191 = vsel %vm1030, %v1183, %v1175
        %v1193 = vsel %vm1030, %v1185, %v1177
        %s1194 = scalar_lea.vmem %s2, 8
        %v1195 = vld [vmem:[%s1194] sm:$0xf]
        %v1196 = vld [vmem:[%s1194 + $0x4] sm:$0x3]
        %v1199 = vunpack.c.l.b16 %v1195
        %v1200 = vunpack.c.l.b16 %v1196
        %v1201 = vpack.c.b16 %v1200, %v1199
        %vm1202 = vcmask 97280
        %v1203 = vsel %vm1202, %v1187, 0
        %v1205 = vsel %vm1202, %v1189, 0
        %v1207 = vsel %vm1202, %v1191, 0
        %v1209 = vsel %vm1202, %v1193, 0
        %vm1211 = vcmask 1045504
        %v1213 = vsel %vm1211, %v1201, 0
        %1215 = vmatprep.subr.bf16.mxu0 0
        %1216 = vmatpush1.bf16.msra.mxu0 0
        %1217 = vmatprep.subr.bf16.mxu0 0
        %1218 = vmatpush1.bf16.msra.mxu0 0
        %1219 = vmatprep.subr.bf16.mxu0 0
        %1220 = vmatpush1.bf16.msra.mxu0 0
        %1221 = vmatprep.subr.bf16.mxu0 0
        %1222 = vmatpush1.bf16.msra.mxu0 0
        %1223 = vmatprep.subr.bf16.mxu0 0
        %1224 = vmatpush1.bf16.msra.mxu0 0
        %1225 = vmatprep.subr.bf16.mxu0 0
        %1226 = vmatpush1.bf16.msra.mxu0 0
        %1227 = vmatprep.subr.bf16.mxu0 0
        %1228 = vmatpush1.bf16.msra.mxu0 0
        %1229 = vmatprep.subr.bf16.mxu0 0
        %1230 = vmatpush1.bf16.msra.mxu0 %v1213
        %1231 = vmatprep.subr.bf16.mxu0 0
        %1232 = vmatpush2.bf16.msra.mxu0 0
        %1233 = vmatprep.subr.bf16.mxu0 0
        %1234 = vmatpush2.bf16.msra.mxu0 0
        %1235 = vmatprep.subr.bf16.mxu0 0
        %1236 = vmatpush2.bf16.msra.mxu0 0
        %1237 = vmatprep.subr.bf16.mxu0 0
        %1238 = vmatpush2.bf16.msra.mxu0 0
        %1239 = vmatprep.subr.bf16.mxu0 0
        %1240 = vmatpush2.bf16.msra.mxu0 0
        %1241 = vmatprep.subr.bf16.mxu0 0
        %1242 = vmatpush2.bf16.msra.mxu0 0
        %1243 = vmatprep.subr.bf16.mxu0 0
        %1244 = vmatpush2.bf16.msra.mxu0 0
        %1245 = vmatprep.subr.bf16.mxu0 0
        %1246 = vmatpush2.bf16.msra.mxu0 0
        %1247 = vmatprep.mubr.bf16.mxu0 0
        %1248 = vmatmul.mubr.bf16.gmra.mxu0 %v1203
        %v1249 = vpop.f32.mrf.mxu0
        %v1250 = vadd.f32 0.0, %v1249
        %v1251 = vpop.f32.mrf.mxu0
        %v1252 = vpop.f32.mrf.mxu0
        %v1253 = vadd.f32 0.0, %v1252
        %v1254 = vpop.f32.mrf.mxu0
        %1255 = vmatprep.mubr.bf16.mxu0 0
        %1256 = vmatmul.mubr.bf16.gmra.mxu0 %v1205
        %v1257 = vpop.f32.mrf.mxu0
        %v1258 = vadd.f32 0.0, %v1257
        %v1259 = vpop.f32.mrf.mxu0
        %v1260 = vpop.f32.mrf.mxu0
        %v1261 = vadd.f32 0.0, %v1260
        %v1262 = vpop.f32.mrf.mxu0
        %1263 = vmatprep.mubr.bf16.mxu0 0
        %1264 = vmatmul.mubr.bf16.gmra.mxu0 %v1207
        %v1265 = vpop.f32.mrf.mxu0
        %v1266 = vadd.f32 0.0, %v1265
        %v1267 = vpop.f32.mrf.mxu0
        %v1268 = vpop.f32.mrf.mxu0
        %v1269 = vadd.f32 0.0, %v1268
        %v1270 = vpop.f32.mrf.mxu0
        %1271 = vmatprep.mubr.bf16.mxu0 0
        %1272 = vmatmul.mubr.bf16.gmra.mxu0 %v1209
        %v1273 = vpop.f32.mrf.mxu0
        %v1274 = vadd.f32 0.0, %v1273
        %v1275 = vpop.f32.mrf.mxu0
        %v1276 = vpop.f32.mrf.mxu0
        %v1277 = vadd.f32 0.0, %v1276
        %v1278 = vpop.f32.mrf.mxu0
        %1279 = vdwg.mxu0
        %v1282 = vunpack.c.l.b16 %v1039
        %v1283 = vunpack.c.l.b16 %v1040
        %v1284 = vpack.c.b16 %v1283, %v1282
        %v1285 = vsel %vm1202, %v1032, 0
        %v1287 = vsel %vm1202, %v1034, 0
        %v1289 = vsel %vm1202, %v1036, 0
        %v1291 = vsel %vm1202, %v1038, 0
        %v1294 = vsel %vm1211, %v1284, 0
        %1296 = vmatprep.subr.bf16.mxu0 0
        %1297 = vmatpush1.bf16.msra.mxu0 0
        %1298 = vmatprep.subr.bf16.mxu0 0
        %1299 = vmatpush1.bf16.msra.mxu0 0
        %1300 = vmatprep.subr.bf16.mxu0 0
        %1301 = vmatpush1.bf16.msra.mxu0 0
        %1302 = vmatprep.subr.bf16.mxu0 0
        %1303 = vmatpush1.bf16.msra.mxu0 0
        %1304 = vmatprep.subr.bf16.mxu0 0
        %1305 = vmatpush1.bf16.msra.mxu0 0
        %1306 = vmatprep.subr.bf16.mxu0 0
        %1307 = vmatpush1.bf16.msra.mxu0 0
        %1308 = vmatprep.subr.bf16.mxu0 0
        %1309 = vmatpush1.bf16.msra.mxu0 0
        %1310 = vmatprep.subr.bf16.mxu0 0
        %1311 = vmatpush1.bf16.msra.mxu0 %v1294
        %1312 = vmatprep.subr.bf16.mxu0 0
        %1313 = vmatpush2.bf16.msra.mxu0 0
        %1314 = vmatprep.subr.bf16.mxu0 0
        %1315 = vmatpush2.bf16.msra.mxu0 0
        %1316 = vmatprep.subr.bf16.mxu0 0
        %1317 = vmatpush2.bf16.msra.mxu0 0
        %1318 = vmatprep.subr.bf16.mxu0 0
        %1319 = vmatpush2.bf16.msra.mxu0 0
        %1320 = vmatprep.subr.bf16.mxu0 0
        %1321 = vmatpush2.bf16.msra.mxu0 0
        %1322 = vmatprep.subr.bf16.mxu0 0
        %1323 = vmatpush2.bf16.msra.mxu0 0
        %1324 = vmatprep.subr.bf16.mxu0 0
        %1325 = vmatpush2.bf16.msra.mxu0 0
        %1326 = vmatprep.subr.bf16.mxu0 0
        %1327 = vmatpush2.bf16.msra.mxu0 0
        %1328 = vmatprep.mubr.bf16.mxu0 0
        %1329 = vmatmul.mubr.bf16.gmra.mxu0 %v1285
        %v1330 = vpop.f32.mrf.mxu0
        %v1331 = vadd.f32 %v1250, %v1330
        %v1332 = vpop.f32.mrf.mxu0
        %v1333 = vpop.f32.mrf.mxu0
        %v1334 = vadd.f32 %v1253, %v1333
        %v1335 = vpop.f32.mrf.mxu0
        %1336 = vmatprep.mubr.bf16.mxu0 0
        %1337 = vmatmul.mubr.bf16.gmra.mxu0 %v1287
        %v1338 = vpop.f32.mrf.mxu0
        %v1339 = vadd.f32 %v1258, %v1338
        %v1340 = vpop.f32.mrf.mxu0
        %v1341 = vpop.f32.mrf.mxu0
        %v1342 = vadd.f32 %v1261, %v1341
        %v1343 = vpop.f32.mrf.mxu0
        %1344 = vmatprep.mubr.bf16.mxu0 0
        %1345 = vmatmul.mubr.bf16.gmra.mxu0 %v1289
        %v1346 = vpop.f32.mrf.mxu0
        %v1347 = vadd.f32 %v1266, %v1346
        %v1348 = vpop.f32.mrf.mxu0
        %v1349 = vpop.f32.mrf.mxu0
        %v1350 = vadd.f32 %v1269, %v1349
        %v1351 = vpop.f32.mrf.mxu0
        %1352 = vmatprep.mubr.bf16.mxu0 0
        %1353 = vmatmul.mubr.bf16.gmra.mxu0 %v1291
        %v1354 = vpop.f32.mrf.mxu0
        %v1355 = vadd.f32 %v1274, %v1354
        %v1356 = vpop.f32.mrf.mxu0
        %v1357 = vpop.f32.mrf.mxu0
        %v1358 = vadd.f32 %v1277, %v1357
        %v1359 = vpop.f32.mrf.mxu0
        %1360 = vdwg.mxu0
        %s1361 = scalar_lea.vmem [#allocation2], 36
        %v1362 = vld [vmem:[%s1361] sm:$0xf]
        %v1363 = vld [vmem:[%s1361 + $0x4] sm:$0xf]
        %v1364 = vld [vmem:[%s1361 + $0xc] sm:$0xf]
        %v1365 = vld [vmem:[%s1361 + $0x10] sm:$0xf]
        %v1366 = vld [vmem:[%s1361 + $0x18] sm:$0xf]
        %v1367 = vld [vmem:[%s1361 + $0x1c] sm:$0xf]
        %v1368 = vld [vmem:[%s1361 + $0x24] sm:$0xf]
        %v1369 = vld [vmem:[%s1361 + $0x28] sm:$0xf]
        %v1370 = vld [vmem:[%s1361 + $0x8] sm:$0x1]
        %v1371 = vld [vmem:[%s1361 + $0x14] sm:$0x1]
        %v1372 = vld [vmem:[%s1361 + $0x20] sm:$0x1]
        %v1373 = vld [vmem:[%s1361 + $0x2c] sm:$0x1]
        %v1374 = vld [vmem:[%s1361] sm:$0xe]
        %v1375 = vld [vmem:[%s1361 + $0xc] sm:$0xe]
        %v1376 = vld [vmem:[%s1361 + $0x18] sm:$0xe]
        %v1377 = vld [vmem:[%s1361 + $0x24] sm:$0xe]
        %v1386 = vunpack.c.l.b16 %v1362
        %v1387 = vunpack.c.l.b16 %v1363
        %v1388 = vunpack.c.l.b16 %v1364
        %v1389 = vunpack.c.l.b16 %v1365
        %v1390 = vunpack.c.l.b16 %v1366
        %v1391 = vunpack.c.l.b16 %v1367
        %v1392 = vunpack.c.l.b16 %v1368
        %v1393 = vunpack.c.l.b16 %v1369
        %v1394 = vpack.c.b16 %v1387, %v1386
        %v1395 = vpack.c.b16 %v1389, %v1388
        %v1396 = vpack.c.b16 %v1391, %v1390
        %v1397 = vpack.c.b16 %v1393, %v1392
        %v1402 = vunpack.c.l.b16 %v1370
        %v1403 = vunpack.c.l.b16 %v1371
        %v1404 = vunpack.c.l.b16 %v1372
        %v1405 = vunpack.c.l.b16 %v1373
        %v1406 = vpack.c.b16 %v1402, %v1402
        %v1407 = vpack.c.b16 %v1403, %v1403
        %v1408 = vpack.c.b16 %v1404, %v1404
        %v1409 = vpack.c.b16 %v1405, %v1405
        %v1411 = vshrl.u32 %v1394, 16
        %v1413 = vshll.u32 %v1394, 16
        %v1415 = vrot.slane %v1413, 1
        %v1416 = vor.u32 %v1411, %v1415
        %v1418 = vshll.u32 %v1406, 16
        %v1420 = vrot.slane %v1418, 1
        %v1421 = vsel %vm931, %v1416, %v1420
        %v1423 = vshrl.u32 %v1395, 16
        %v1425 = vshll.u32 %v1395, 16
        %v1427 = vrot.slane %v1425, 1
        %v1428 = vor.u32 %v1423, %v1427
        %v1430 = vshll.u32 %v1407, 16
        %v1432 = vrot.slane %v1430, 1
        %v1433 = vsel %vm931, %v1428, %v1432
        %v1435 = vshrl.u32 %v1396, 16
        %v1437 = vshll.u32 %v1396, 16
        %v1439 = vrot.slane %v1437, 1
        %v1440 = vor.u32 %v1435, %v1439
        %v1442 = vshll.u32 %v1408, 16
        %v1444 = vrot.slane %v1442, 1
        %v1445 = vsel %vm931, %v1440, %v1444
        %v1447 = vshrl.u32 %v1397, 16
        %v1449 = vshll.u32 %v1397, 16
        %v1451 = vrot.slane %v1449, 1
        %v1452 = vor.u32 %v1447, %v1451
        %v1454 = vshll.u32 %v1409, 16
        %v1456 = vrot.slane %v1454, 1
        %v1457 = vsel %vm931, %v1452, %v1456
        %1458 = vrot.lane.b32.xlu0 %v1421, 4
        %v1459 = vpop.permute.xlu0 %1458
        %1460 = vrot.lane.b32.xlu0 %v1433, 4
        %v1461 = vpop.permute.xlu0 %1460
        %1462 = vrot.lane.b32.xlu0 %v1445, 4
        %v1463 = vpop.permute.xlu0 %1462
        %1464 = vrot.lane.b32.xlu0 %v1457, 4
        %v1465 = vpop.permute.xlu0 %1464
        %v1470 = vunpack.c.l.b16 %v1374
        %v1471 = vunpack.c.l.b16 %v1375
        %v1472 = vunpack.c.l.b16 %v1376
        %v1473 = vunpack.c.l.b16 %v1377
        %v1474 = vpack.c.b16 %v1387, %v1470
        %v1475 = vpack.c.b16 %v1389, %v1471
        %v1476 = vpack.c.b16 %v1391, %v1472
        %v1477 = vpack.c.b16 %v1393, %v1473
        %v1478 = vrot.slane %v1474, 1
        %v1479 = vrot.slane %v1406, 1
        %v1480 = vsel %vm1000, %v1478, %v1479
        %v1481 = vrot.slane %v1475, 1
        %v1482 = vrot.slane %v1407, 1
        %v1483 = vsel %vm1000, %v1481, %v1482
        %v1484 = vrot.slane %v1476, 1
        %v1485 = vrot.slane %v1408, 1
        %v1486 = vsel %vm1000, %v1484, %v1485
        %v1487 = vrot.slane %v1477, 1
        %v1488 = vrot.slane %v1409, 1
        %v1489 = vsel %vm1000, %v1487, %v1488
        %1490 = vrot.lane.b32.xlu0 %v1480, 8
        %v1491 = vpop.permute.xlu0 %1490
        %1492 = vrot.lane.b32.xlu0 %v1483, 8
        %v1493 = vpop.permute.xlu0 %1492
        %1494 = vrot.lane.b32.xlu0 %v1486, 8
        %v1495 = vpop.permute.xlu0 %1494
        %1496 = vrot.lane.b32.xlu0 %v1489, 8
        %v1497 = vpop.permute.xlu0 %1496
        %v1499 = vsel %vm1021, %v1394, %v1459
        %v1501 = vsel %vm1021, %v1395, %v1461
        %v1503 = vsel %vm1021, %v1396, %v1463
        %v1505 = vsel %vm1021, %v1397, %v1465
        %v1507 = vsel %vm1030, %v1499, %v1491
        %v1509 = vsel %vm1030, %v1501, %v1493
        %v1511 = vsel %vm1030, %v1503, %v1495
        %v1513 = vsel %vm1030, %v1505, %v1497
        %s1514 = scalar_lea.vmem %s2, 16
        %v1515 = vld [vmem:[%s1514] sm:$0xf]
        %v1516 = vld [vmem:[%s1514 + $0x4] sm:$0x3]
        %v1519 = vunpack.c.l.b16 %v1515
        %v1520 = vunpack.c.l.b16 %v1516
        %v1521 = vpack.c.b16 %v1520, %v1519
        %v1522 = vsel %vm1202, %v1507, 0
        %v1524 = vsel %vm1202, %v1509, 0
        %v1526 = vsel %vm1202, %v1511, 0
        %v1528 = vsel %vm1202, %v1513, 0
        %v1531 = vsel %vm1211, %v1521, 0
        %1533 = vmatprep.subr.bf16.mxu0 0
        %1534 = vmatpush1.bf16.msra.mxu0 0
        %1535 = vmatprep.subr.bf16.mxu0 0
        %1536 = vmatpush1.bf16.msra.mxu0 0
        %1537 = vmatprep.subr.bf16.mxu0 0
        %1538 = vmatpush1.bf16.msra.mxu0 0
        %1539 = vmatprep.subr.bf16.mxu0 0
        %1540 = vmatpush1.bf16.msra.mxu0 0
        %1541 = vmatprep.subr.bf16.mxu0 0
        %1542 = vmatpush1.bf16.msra.mxu0 0
        %1543 = vmatprep.subr.bf16.mxu0 0
        %1544 = vmatpush1.bf16.msra.mxu0 0
        %1545 = vmatprep.subr.bf16.mxu0 0
        %1546 = vmatpush1.bf16.msra.mxu0 0
        %1547 = vmatprep.subr.bf16.mxu0 0
        %1548 = vmatpush1.bf16.msra.mxu0 %v1531
        %1549 = vmatprep.subr.bf16.mxu0 0
        %1550 = vmatpush2.bf16.msra.mxu0 0
        %1551 = vmatprep.subr.bf16.mxu0 0
        %1552 = vmatpush2.bf16.msra.mxu0 0
        %1553 = vmatprep.subr.bf16.mxu0 0
        %1554 = vmatpush2.bf16.msra.mxu0 0
        %1555 = vmatprep.subr.bf16.mxu0 0
        %1556 = vmatpush2.bf16.msra.mxu0 0
        %1557 = vmatprep.subr.bf16.mxu0 0
        %1558 = vmatpush2.bf16.msra.mxu0 0
        %1559 = vmatprep.subr.bf16.mxu0 0
        %1560 = vmatpush2.bf16.msra.mxu0 0
        %1561 = vmatprep.subr.bf16.mxu0 0
        %1562 = vmatpush2.bf16.msra.mxu0 0
        %1563 = vmatprep.subr.bf16.mxu0 0
        %1564 = vmatpush2.bf16.msra.mxu0 0
        %1565 = vmatprep.mubr.bf16.mxu0 0
        %1566 = vmatmul.mubr.bf16.gmra.mxu0 %v1522
        %v1567 = vpop.f32.mrf.mxu0
        %v1568 = vadd.f32 0.0, %v1567
        %v1569 = vpop.f32.mrf.mxu0
        %v1570 = vpop.f32.mrf.mxu0
        %v1571 = vadd.f32 0.0, %v1570
        %v1572 = vpop.f32.mrf.mxu0
        %1573 = vmatprep.mubr.bf16.mxu0 0
        %1574 = vmatmul.mubr.bf16.gmra.mxu0 %v1524
        %v1575 = vpop.f32.mrf.mxu0
        %v1576 = vadd.f32 0.0, %v1575
        %v1577 = vpop.f32.mrf.mxu0
        %v1578 = vpop.f32.mrf.mxu0
        %v1579 = vadd.f32 0.0, %v1578
        %v1580 = vpop.f32.mrf.mxu0
        %1581 = vmatprep.mubr.bf16.mxu0 0
        %1582 = vmatmul.mubr.bf16.gmra.mxu0 %v1526
        %v1583 = vpop.f32.mrf.mxu0
        %v1584 = vadd.f32 0.0, %v1583
        %v1585 = vpop.f32.mrf.mxu0
        %v1586 = vpop.f32.mrf.mxu0
        %v1587 = vadd.f32 0.0, %v1586
        %v1588 = vpop.f32.mrf.mxu0
        %1589 = vmatprep.mubr.bf16.mxu0 0
        %1590 = vmatmul.mubr.bf16.gmra.mxu0 %v1528
        %v1591 = vpop.f32.mrf.mxu0
        %v1592 = vadd.f32 0.0, %v1591
        %v1593 = vpop.f32.mrf.mxu0
        %v1594 = vpop.f32.mrf.mxu0
        %v1595 = vadd.f32 0.0, %v1594
        %v1596 = vpop.f32.mrf.mxu0
        %1597 = vdwg.mxu0
        %v1598 = vadd.f32 %v1331, %v1568
        %v1599 = vadd.f32 %v1334, %v1571
        %v1600 = vadd.f32 %v1339, %v1576
        %v1601 = vadd.f32 %v1342, %v1579
        %v1602 = vadd.f32 %v1347, %v1584
        %v1603 = vadd.f32 %v1350, %v1587
        %v1604 = vadd.f32 %v1355, %v1592
        %v1605 = vadd.f32 %v1358, %v1595
        %v1606 = vld [vmem:[%s6] sm:$0x1]
        %v1608 = vlaneseq
        %v1609 = vshrl.u32 %v1608, 7
        %v1610 = vsub.s32 0, %v1609
        %v1611 = vrot.slane %v1606, %v1610
        %v1613 = vmul.f32 %v1598, %v1611
        %v1614 = vmul.f32 %v1599, %v1611
        %v1615 = vmul.f32 %v1600, %v1611
        %v1616 = vmul.f32 %v1601, %v1611
        %v1617 = vmul.f32 %v1602, %v1611
        %v1618 = vmul.f32 %v1603, %v1611
        %v1619 = vmul.f32 %v1604, %v1611
        %v1620 = vmul.f32 %v1605, %v1611
        %v1621 = vld [vmem:[%s7] sm:$0x1]
        %v1623 = vlaneseq
        %v1624 = vshrl.u32 %v1623, 7
        %v1625 = vsub.s32 0, %v1624
        %v1626 = vrot.slane %v1621, %v1625
        %v1628 = vadd.f32 %v1613, %v1626
        %v1629 = vadd.f32 %v1614, %v1626
        %v1630 = vadd.f32 %v1615, %v1626
        %v1631 = vadd.f32 %v1616, %v1626
        %v1632 = vadd.f32 %v1617, %v1626
        %v1633 = vadd.f32 %v1618, %v1626
        %v1634 = vadd.f32 %v1619, %v1626
        %v1635 = vadd.f32 %v1620, %v1626
        %v1636 = vmax.f32 %v1628, 0.0
        %v1637 = vmax.f32 %v1629, 0.0
        %v1638 = vmax.f32 %v1630, 0.0
        %v1639 = vmax.f32 %v1631, 0.0
        %v1640 = vmax.f32 %v1632, 0.0
        %v1641 = vmax.f32 %v1633, 0.0
        %v1642 = vmax.f32 %v1634, 0.0
        %v1643 = vmax.f32 %v1635, 0.0
        %v1644 = vpack.c.bf16 %v1637, %v1636
        %v1645 = vpack.c.bf16 %v1639, %v1638
        %v1646 = vpack.c.bf16 %v1641, %v1640
        %v1647 = vpack.c.bf16 %v1643, %v1642
        %v1648 = vld [vmem:[%s3] sm:$0x3]
        %v1650 = vsel %vm1021, %v1644, 0
        %v1653 = vsel %vm1021, %v1645, 0
        %v1656 = vsel %vm1021, %v1646, 0
        %v1659 = vsel %vm1021, %v1647, 0
        %vm1661 = vcmask 1041408
        %v1663 = vsel %vm1661, %v1648, 0
        %1665 = vmatprep.subr.bf16.mxu0 0
        %1666 = vmatpush1.bf16.msra.mxu0 0
        %1667 = vmatprep.subr.bf16.mxu0 0
        %1668 = vmatpush1.bf16.msra.mxu0 0
        %1669 = vmatprep.subr.bf16.mxu0 0
        %1670 = vmatpush1.bf16.msra.mxu0 0
        %1671 = vmatprep.subr.bf16.mxu0 0
        %1672 = vmatpush1.bf16.msra.mxu0 0
        %1673 = vmatprep.subr.bf16.mxu0 0
        %1674 = vmatpush1.bf16.msra.mxu0 0
        %1675 = vmatprep.subr.bf16.mxu0 0
        %1676 = vmatpush1.bf16.msra.mxu0 0
        %1677 = vmatprep.subr.bf16.mxu0 0
        %1678 = vmatpush1.bf16.msra.mxu0 0
        %1679 = vmatprep.subr.bf16.mxu0 0
        %1680 = vmatpush1.bf16.msra.mxu0 %v1663
        %1681 = vmatprep.subr.bf16.mxu0 0
        %1682 = vmatpush2.bf16.msra.mxu0 0
        %1683 = vmatprep.subr.bf16.mxu0 0
        %1684 = vmatpush2.bf16.msra.mxu0 0
        %1685 = vmatprep.subr.bf16.mxu0 0
        %1686 = vmatpush2.bf16.msra.mxu0 0
        %1687 = vmatprep.subr.bf16.mxu0 0
        %1688 = vmatpush2.bf16.msra.mxu0 0
        %1689 = vmatprep.subr.bf16.mxu0 0
        %1690 = vmatpush2.bf16.msra.mxu0 0
        %1691 = vmatprep.subr.bf16.mxu0 0
        %1692 = vmatpush2.bf16.msra.mxu0 0
        %1693 = vmatprep.subr.bf16.mxu0 0
        %1694 = vmatpush2.bf16.msra.mxu0 0
        %1695 = vmatprep.subr.bf16.mxu0 0
        %1696 = vmatpush2.bf16.msra.mxu0 0
        %1697 = vmatprep.mubr.bf16.mxu0 0
        %1698 = vmatmul.mubr.bf16.gmra.mxu0 %v1650
        %v1699 = vpop.f32.mrf.mxu0
        %v1700 = vadd.f32 0.0, %v1699
        %v1701 = vpop.f32.mrf.mxu0
        %v1702 = vpop.f32.mrf.mxu0
        %v1703 = vadd.f32 0.0, %v1702
        %v1704 = vpop.f32.mrf.mxu0
        %1705 = vmatprep.mubr.bf16.mxu0 0
        %1706 = vmatmul.mubr.bf16.gmra.mxu0 %v1653
        %v1707 = vpop.f32.mrf.mxu0
        %v1708 = vadd.f32 0.0, %v1707
        %v1709 = vpop.f32.mrf.mxu0
        %v1710 = vpop.f32.mrf.mxu0
        %v1711 = vadd.f32 0.0, %v1710
        %v1712 = vpop.f32.mrf.mxu0
        %1713 = vmatprep.mubr.bf16.mxu0 0
        %1714 = vmatmul.mubr.bf16.gmra.mxu0 %v1656
        %v1715 = vpop.f32.mrf.mxu0
        %v1716 = vadd.f32 0.0, %v1715
        %v1717 = vpop.f32.mrf.mxu0
        %v1718 = vpop.f32.mrf.mxu0
        %v1719 = vadd.f32 0.0, %v1718
        %v1720 = vpop.f32.mrf.mxu0
        %1721 = vmatprep.mubr.bf16.mxu0 0
        %1722 = vmatmul.mubr.bf16.gmra.mxu0 %v1659
        %v1723 = vpop.f32.mrf.mxu0
        %v1724 = vadd.f32 0.0, %v1723
        %v1725 = vpop.f32.mrf.mxu0
        %v1726 = vpop.f32.mrf.mxu0
        %v1727 = vadd.f32 0.0, %v1726
        %v1728 = vpop.f32.mrf.mxu0
        %1729 = vdwg.mxu0
        %s1730 = smul.u32 %s447, 2
        %s1731 = smul.addr %s1730, 4
        %s1732 = scalar_lea.vmem %s355, %s1731 [#allocation3]
        %v1733 = vld [vmem:[%s1732] sm:$0xf]
        %v1734 = vld [vmem:[%s1732 + $0x4] sm:$0xf]
        %v1735 = vld [vmem:[%s1732 + $0x8] sm:$0xf]
        %v1736 = vld [vmem:[%s1732 + $0xc] sm:$0xf]
        %v1737 = vld [vmem:[%s1732 + $0x10] sm:$0xf]
        %v1738 = vld [vmem:[%s1732 + $0x14] sm:$0xf]
        %v1739 = vld [vmem:[%s1732 + $0x18] sm:$0xf]
        %v1740 = vld [vmem:[%s1732 + $0x1c] sm:$0xf]
        %v1741 = vunpack.c.l.bf16 %v1733
        %v1742 = vunpack.c.l.bf16 %v1734
        %v1743 = vunpack.c.l.bf16 %v1735
        %v1744 = vunpack.c.l.bf16 %v1736
        %v1745 = vunpack.c.l.bf16 %v1737
        %v1746 = vunpack.c.l.bf16 %v1738
        %v1747 = vunpack.c.l.bf16 %v1739
        %v1748 = vunpack.c.l.bf16 %v1740
        %v1749 = vld [vmem:[%s8] sm:$0x1]
        %v1751 = vlaneseq
        %v1752 = vshrl.u32 %v1751, 7
        %v1753 = vsub.s32 0, %v1752
        %v1754 = vrot.slane %v1749, %v1753
        %v1756 = vmul.f32 %v1700, %v1754
        %v1757 = vmul.f32 %v1703, %v1754
        %v1758 = vmul.f32 %v1708, %v1754
        %v1759 = vmul.f32 %v1711, %v1754
        %v1760 = vmul.f32 %v1716, %v1754
        %v1761 = vmul.f32 %v1719, %v1754
        %v1762 = vmul.f32 %v1724, %v1754
        %v1763 = vmul.f32 %v1727, %v1754
        %v1764 = vld [vmem:[%s9] sm:$0x1]
        %v1766 = vlaneseq
        %v1767 = vshrl.u32 %v1766, 7
        %v1768 = vsub.s32 0, %v1767
        %v1769 = vrot.slane %v1764, %v1768
        %v1771 = vadd.f32 %v1756, %v1769
        %v1772 = vadd.f32 %v1757, %v1769
        %v1773 = vadd.f32 %v1758, %v1769
        %v1774 = vadd.f32 %v1759, %v1769
        %v1775 = vadd.f32 %v1760, %v1769
        %v1776 = vadd.f32 %v1761, %v1769
        %v1777 = vadd.f32 %v1762, %v1769
        %v1778 = vadd.f32 %v1763, %v1769
        %v1779 = vadd.f32 %v1771, %v1741
        %v1780 = vadd.f32 %v1772, %v1742
        %v1781 = vadd.f32 %v1773, %v1743
        %v1782 = vadd.f32 %v1774, %v1744
        %v1783 = vadd.f32 %v1775, %v1745
        %v1784 = vadd.f32 %v1776, %v1746
        %v1785 = vadd.f32 %v1777, %v1747
        %v1786 = vadd.f32 %v1778, %v1748
        %v1787 = vmax.f32 %v1779, 0.0
        %v1788 = vmax.f32 %v1780, 0.0
        %v1789 = vmax.f32 %v1781, 0.0
        %v1790 = vmax.f32 %v1782, 0.0
        %v1791 = vmax.f32 %v1783, 0.0
        %v1792 = vmax.f32 %v1784, 0.0
        %v1793 = vmax.f32 %v1785, 0.0
        %v1794 = vmax.f32 %v1786, 0.0
        %1795 = vst.msk [vmem:[%s391] sm:$0xff] %vm508, %v1787
        %1796 = vst.msk [vmem:[%s391 + $0x8] sm:$0xff] %vm508, %v1788
        %1797 = vst.msk [vmem:[%s391 + $0x10] sm:$0xff] %vm508, %v1789
        %1798 = vst.msk [vmem:[%s391 + $0x18] sm:$0xff] %vm508, %v1790
        %1799 = vst.msk [vmem:[%s391 + $0x20] sm:$0xff] %vm508, %v1791
        %1800 = vst.msk [vmem:[%s391 + $0x28] sm:$0xff] %vm508, %v1792
        %1801 = vst.msk [vmem:[%s391 + $0x30] sm:$0xff] %vm508, %v1793
        %1802 = vst.msk [vmem:[%s391 + $0x38] sm:$0xff] %vm508, %v1794
        %s1803 = sand.u32 %s264, 1
        %s1804 = scalar_lea.sflag [#allocation5], %s1803
        %s1805 = sand.u32 %s264, 1
        %s1806 = smul.addr %s1805, 64
        %s1807 = scalar_lea.vmem [#allocation6], %s1806
        // Predicated region
        $region73: #{tpu_custom_call.1} parent=59 // pred_check
          %p1808 = pneg %p274
        $region74: #{tpu_custom_call.1} parent=59 // pred_check_branch
          %1810 = sbr.rel (%p1808) target = $region76
        $region75: #{tpu_custom_call.1} parent=59 // pred_region
          %s1811 = smul.u32 4, %s32
          %s1813 = ssub.s32 1024, 1024
          %1814 = vsyncadd %s1804, %s1813
          %s1815 = smul.addr %s1811, 2
          %s1816 = smul.addr %s31, 32
          %s1817 = sadd.s32 %s1815, %s1816
          %s1818 = smul.addr %s1817, 128
          %s1819 = scalar_lea.hbm %s10, %s1818
          %s1820 = sshll.u32 %s1807, 4
          %s1821 = int_to_ptr.vmem [resolvable:$true] %s1820
          %1826 = dma.vmem_to_hbm [thread:$0]  %s1821, 1024, %s1819, %s1804, 128, 128, 8
        $region76: #{tpu_custom_call.1} parent=59 // pred_fallthru
          _
      $region60: #{tpu_custom_call.1} parent=5 // pred_fallthru
        _
      %p1827 = scmp.le.s32.totalorder 2, %s22
      // Predicated region
      $region77: #{tpu_custom_call.1} parent=5 // pred_check
        %p1828 = pneg %p1827
      $region78: #{tpu_custom_call.1} parent=5 // pred_check_branch
        %1830 = sbr.rel (%p1828) target = $region80
      $region79: #{tpu_custom_call.1} parent=5 // pred_region
        %s1831 = ssub.s32 %s22, 2
        // Predicated region
        $region81: #{tpu_custom_call.1} parent=79 // pred_check
          %p1832 = pneg %p280
        $region82: #{tpu_custom_call.1} parent=79 // pred_check_branch
          %1834 = sbr.rel (%p1832) target = $region84
        $region83: #{tpu_custom_call.1} parent=79 // pred_region
          %s1835 = sand.u32 %s265, 1
          %s1836 = scalar_lea.sflag [#allocation5], %s1835
          %s1837 = sand.u32 %s265, 1
          %s1838 = smul.addr %s1837, 64
          %s1839 = scalar_lea.vmem [#allocation6], %s1838
          %1840 = dma.done %s1836, 1024
        $region84: #{tpu_custom_call.1} parent=79 // pred_fallthru
          _
      $region80: #{tpu_custom_call.1} parent=5 // pred_fallthru
        _
    $region6: #{tpu_custom_call.1} parent=1 // loop_footer
      %s26 = sadd.s32 1, %s22
    $region7: #{tpu_custom_call.1} parent=1 // loop_footer_branch
      %21 = sbr.rel target = $region3
    $region8: #{tpu_custom_call.1} parent=1 // loop_exit
      _
    %1841 = vsyncpa [#allocation4], 1
    %s1842 = scalar_lea.sflag [#allocation4], 1
    %1843 = vsyncpa %s1842, 1
    %1844 = vsyncpa [#allocation5], 1
    %s1845 = scalar_lea.sflag [#allocation5], 1
    %1846 = vsyncpa %s1845, 1

</llo_original>
